<compile_context>
chip_gen: v7x
topology: tpu7x:2x2x1
jax: 0.10.0
libtpu: 0.0.40
codegen_flags: <defaults>
</compile_context>

<pallas_src>
import functools

import jax
import jax.numpy as jnp
from jax import lax
from jax.experimental import pallas as pl
from jax.experimental.pallas import tpu as pltpu

_SQRT_2 = 1.4142135623730951


def _erf_poly(x):
    """Abramowitz & Stegun 7.1.26 erf approximation (max abs err 1.5e-7).

    Uses only exp / mul / add / where, all of which lower on the TPU VPU/EUP,
    so the kernel never relies on an erf lowering rule.
    """
    a1, a2, a3, a4, a5 = (0.254829592, -0.284496736, 1.421413741,
                          -1.453152027, 1.061405429)
    p = 0.3275911
    ax = jnp.abs(x)
    t = 1.0 / (1.0 + p * ax)
    poly = ((((a5 * t + a4) * t + a3) * t + a2) * t + a1) * t
    y = 1.0 - poly * jnp.exp(-ax * ax)
    return jnp.where(x >= 0.0, y, -y)


def _gelu_exact(x):
    # PyTorch nn.GELU() default (approximate='none'): 0.5*x*(1+erf(x/sqrt(2)))
    return 0.5 * x * (1.0 + _erf_poly(x / _SQRT_2))


# ---------------------------------------------------------------------------
# Kernels
# ---------------------------------------------------------------------------

def dino_mlp_kernel(x_ref, w1_ref, b1_ref, w2_ref, b2_ref, w3_ref, b3_ref,
                    bn_ref):
    """Grid = (batch_tiles,). 3-layer MLP (bf16 MXU, f32 accum) + row
    L2-normalize; writes the normalized bottleneck directly in bf16."""
    h = jnp.dot(x_ref[...], w1_ref[...], preferred_element_type=jnp.float32)
    h = _gelu_exact(h + b1_ref[...])
    h = jnp.dot(h.astype(jnp.bfloat16), w2_ref[...],
                preferred_element_type=jnp.float32)
    h = _gelu_exact(h + b2_ref[...])
    b = jnp.dot(h.astype(jnp.bfloat16), w3_ref[...],
                preferred_element_type=jnp.float32) + b3_ref[...]
    # F.normalize(dim=-1, p=2): b / max(||b||, 1e-12).  Clamp the squared norm
    # at eps^2 so rsqrt (EUP) replaces sqrt + divide on the VPU.
    sumsq = jnp.sum(b * b, axis=-1, keepdims=True)
    bn_ref[...] = (b * lax.rsqrt(jnp.maximum(sumsq, 1e-24))).astype(bn_ref.dtype)


def dino_last_layer_kernel(bn_ref, wl_ref, o_ref):
    """Grid = (out_tiles, batch_tiles), out OUTER so each wl tile is fetched
    exactly once.  weight_norm scale is pre-folded into wl, so the epilogue is
    just cast + lane-dense store."""
    o_ref[...] = jnp.dot(bn_ref[...], wl_ref[...],
                         preferred_element_type=jnp.float32).astype(o_ref.dtype)


# ---------------------------------------------------------------------------
# Param prep (one-time, outside the jitted forward)
# ---------------------------------------------------------------------------

def prepare_dino_head_params(w1, b1, w2, b2, w3, b3, v_last,
                             weight_dtype=jnp.bfloat16):
    """Transpose PyTorch [out, in] weights to [in, out], cast matmul weights to
    bf16, keep biases f32 as [1, out], and fold the weight_norm normalization
    (g == 1) directly into the last-layer weight."""
    w1_t = jnp.transpose(w1).astype(weight_dtype)
    w2_t = jnp.transpose(w2).astype(weight_dtype)
    w3_t = jnp.transpose(w3).astype(weight_dtype)
    v32 = v_last.astype(jnp.float32)
    # Row-wise ||v||; epsilon guard avoids NaN on an all-zero row (PyTorch
    # weight_norm would NaN there).
    norm = jnp.sqrt(jnp.sum(v32 * v32, axis=-1, keepdims=True))
    wl_scaled = jnp.transpose(v32 / jnp.maximum(norm, 1e-12)).astype(weight_dtype)
    return (w1_t, b1.astype(jnp.float32)[None, :],
            w2_t, b2.astype(jnp.float32)[None, :],
            w3_t, b3.astype(jnp.float32)[None, :],
            wl_scaled)


# ---------------------------------------------------------------------------
# Tile / VMEM policy
# ---------------------------------------------------------------------------

def _vmem_limit_bytes():
    """Generation-aware scoped-VMEM limit (75% of physical per-core VMEM)."""
    try:
        cap = int(pltpu.get_tpu_info().vmem_capacity_bytes)
    except Exception:  # pragma: no cover - fallback if query unavailable
        cap = 128 * 1024 * 1024
    return (cap * 3) // 4


def _pick_tile(dim, candidates):
    for c in candidates:
        if dim % c == 0:
            return c
    return dim


def _pick_last_layer_tiles(batch, out_dim, bneck, out_itemsize, vmem_budget):
    """Largest (tb, tn) divisor pair that fits the VMEM budget.  Large tb
    pushes the bn@wl matmul past the HBM ridge (~240/650/310 FLOP/byte on
    v5e/v6e/v7x); large tn amortizes the ~0.35us grid-step overhead and keeps
    output stores lane-dense."""
    tb_cands = [c for c in (1024, 512, 256, 128, 64, 32, 16, 8)
                if batch % c == 0] or [batch]
    tn_cands = [c for c in (8192, 4096, 2048, 1024, 512, 256, 128)
                if out_dim % c == 0] or [out_dim]
    for tb in tb_cands:
        for tn in tn_cands:
            need = (2 * bneck * tn * 2          # wl tile, bf16, double-buffered
                    + 2 * tb * bneck * 2        # bn tile, bf16, double-buffered
                    + 2 * tb * tn * out_itemsize)  # output tile, double-buffered
            if need <= vmem_budget:
                return tb, tn
    return tb_cands[-1], tn_cands[-1]


# ---------------------------------------------------------------------------
# Wrapper
# ---------------------------------------------------------------------------

@functools.partial(jax.jit,
                   static_argnames=("tb_mlp", "tb_last", "tn_last", "out_dtype"))
def dino_head_forward(x, w1_t, b1, w2_t, b2, w3_t, b3, wl_scaled, *,
                      tb_mlp=None, tb_last=None, tn_last=None, out_dtype=None):
    """x: [B, in_dim] (f32/bf16); params from prepare_dino_head_params."""
    batch, in_dim = x.shape
    hidden = w1_t.shape[1]
    bneck = w3_t.shape[1]
    out_dim = wl_scaled.shape[1]
    out_dtype = jnp.dtype(out_dtype) if out_dtype is not None else x.dtype
    out_itemsize = jnp.dtype(out_dtype).itemsize

    vmem_limit = _vmem_limit_bytes()

    if tb_mlp is None:
        tb_mlp = _pick_tile(batch, (512, 256, 128, 64, 32, 16, 8))
    if tb_last is None or tn_last is None:
        tb_auto, tn_auto = _pick_last_layer_tiles(
            batch, out_dim, bneck, out_itemsize, vmem_limit // 2)
        tb_last = tb_last if tb_last is not None else tb_auto
        tn_last = tn_last if tn_last is not None else tn_auto

    assert batch % tb_mlp == 0, (batch, tb_mlp)
    assert batch % tb_last == 0 and out_dim % tn_last == 0, (batch, tb_last,
                                                             out_dim, tn_last)

    # Halve x HBM traffic and drop the in-kernel cast.
    x_bf16 = x.astype(jnp.bfloat16)

    def _resident(shape):
        # Grid-invariant operand: fetched once, single-buffered (saves VMEM on
        # v7x where the three bf16 MLP weights are ~17 MiB at real DINO dims).
        return pl.BlockSpec(shape, lambda i: (0,) * len(shape),
                            pipeline_mode=pl.Buffered(1))

    # -------------------- kernel 1: MLP + L2 normalize --------------------
    mlp_flops = 2 * batch * (in_dim * hidden + hidden * hidden + hidden * bneck)
    mlp_bytes = (batch * in_dim * 2
                 + sum(int(a.size) * a.dtype.itemsize
                       for a in (w1_t, b1, w2_t, b2, w3_t, b3))
                 + batch * bneck * 2)

    bn = pl.pallas_call(
        dino_mlp_kernel,
        out_shape=jax.ShapeDtypeStruct((batch, bneck), jnp.bfloat16),
        grid_spec=pltpu.PrefetchScalarGridSpec(
            num_scalar_prefetch=0,
            grid=(batch // tb_mlp,),
            in_specs=[
                pl.BlockSpec((tb_mlp, in_dim), lambda i: (i, 0)),  # x tile
                _resident((in_dim, hidden)),                       # W1
                _resident((1, hidden)),                            # b1
                _resident((hidden, hidden)),                       # W2
                _resident((1, hidden)),                            # b2
                _resident((hidden, bneck)),                        # W3
                _resident((1, bneck)),                             # b3
            ],
            out_specs=pl.BlockSpec((tb_mlp, bneck), lambda i: (i, 0)),
        ),
        compiler_params=pltpu.CompilerParams(
            dimension_semantics=("parallel",),
            vmem_limit_bytes=vmem_limit,
        ),
        cost_estimate=pl.CostEstimate(
            flops=mlp_flops,
            transcendentals=2 * batch * hidden,   # exp in the two GELU erf's
            bytes_accessed=mlp_bytes),
    )(x_bf16, w1_t, b1, w2_t, b2, w3_t, b3)

    # -------------------- kernel 2: bn @ (v/||v||)^T -----------------------
    last_flops = 2 * batch * bneck * out_dim
    last_bytes = (batch * bneck * 2
                  + int(wl_scaled.size) * wl_scaled.dtype.itemsize
                  + batch * out_dim * out_itemsize)

    out = pl.pallas_call(
        dino_last_layer_kernel,
        out_shape=jax.ShapeDtypeStruct((batch, out_dim), out_dtype),
        grid_spec=pltpu.PrefetchScalarGridSpec(
            num_scalar_prefetch=0,
            # out axis OUTER: each wl tile is DMA'd exactly once for the whole
            # batch (no per-batch-tile re-stream of the 2*bneck*out_dim weight).
            grid=(out_dim // tn_last, batch // tb_last),
            in_specs=[
                pl.BlockSpec((tb_last, bneck), lambda oi, bi: (bi, 0)),  # bn
                pl.BlockSpec((bneck, tn_last), lambda oi, bi: (0, oi)),  # wl
            ],
            out_specs=pl.BlockSpec((tb_last, tn_last), lambda oi, bi: (bi, oi)),
        ),
        compiler_params=pltpu.CompilerParams(
            # Both axes independent -> megacore can shard either on v7x.
            dimension_semantics=("parallel", "parallel"),
            vmem_limit_bytes=vmem_limit,
        ),
        cost_estimate=pl.CostEstimate(
            flops=last_flops, transcendentals=0, bytes_accessed=last_bytes),
    )(bn, wl_scaled)

    return out


# ---------------------------------------------------------------------------
# Pure-JAX reference (f32) for a correctness check
# ---------------------------------------------------------------------------

def dino_head_reference(x, w1, b1, w2, b2, w3, b3, v_last):
    def gelu(t):
        return 0.5 * t * (1.0 + lax.erf(t / _SQRT_2))
    h = gelu(x @ w1.T + b1)
    h = gelu(h @ w2.T + b2)
    b = h @ w3.T + b3
    bn = b / jnp.maximum(jnp.linalg.norm(b, axis=-1, keepdims=True), 1e-12)
    w_last = v_last / jnp.linalg.norm(v_last, axis=-1, keepdims=True)  # g == 1
    return bn @ w_last.T


# ---------------------------------------------------------------------------
# Main
# ---------------------------------------------------------------------------

if __name__ == "__main__":
    # Small but lane-aligned shapes (feature dims multiples of 128, batch a
    # multiple of 8), consistent with the DINOHead MLP structure.
    batch, in_dim, hidden_dim, bottleneck_dim, out_dim = 16, 128, 256, 128, 512

    key = jax.random.PRNGKey(0)
    keys = jax.random.split(key, 6)

    def trunc_normal(k, shape, std=0.02):
        # deterministic stand-in for torch trunc_normal_(std=0.02)
        return std * jax.random.truncated_normal(k, -2.0, 2.0, shape, jnp.float32)

    x = jax.random.normal(keys[0], (batch, in_dim), jnp.float32)

    w1 = trunc_normal(keys[1], (hidden_dim, in_dim))
    b1 = jnp.zeros((hidden_dim,), jnp.float32)
    w2 = trunc_normal(keys[2], (hidden_dim, hidden_dim))
    b2 = jnp.zeros((hidden_dim,), jnp.float32)
    w3 = trunc_normal(keys[3], (bottleneck_dim, hidden_dim))
    b3 = jnp.zeros((bottleneck_dim,), jnp.float32)
    # weight_norm 'v' parameter of the last (bias-free) linear; weight_g == 1.
    v_last = trunc_normal(keys[4], (out_dim, bottleneck_dim), std=0.1)

    params = prepare_dino_head_params(w1, b1, w2, b2, w3, b3, v_last)

    # tb_mlp=8 -> grid=(2,) for the MLP kernel; tb_last=8, tn_last=128 ->
    # grid=(4, 2) for the last-layer kernel: exercises streamed wl tiles, the
    # out-outer ordering, and multiple batch tiles.
    out = dino_head_forward(x, *params, tb_mlp=8, tb_last=8, tn_last=128)
    out = jax.block_until_ready(out)

    ref = dino_head_reference(x, w1, b1, w2, b2, w3, b3, v_last)
    assert out.shape == (batch, out_dim)
    # bf16 MXU operands / bf16 bottleneck intermediate with f32 accumulation
    # (intentional quantization) -> loosened tolerance vs the f32 reference.
    max_err = float(jnp.max(jnp.abs(out.astype(jnp.float32) - ref)))
    assert jnp.allclose(out.astype(jnp.float32), ref, rtol=2e-2, atol=2e-2), (
        "mismatch vs reference: max abs err = %g" % max_err)

    print("KERNEL_OK")
</pallas_src>

<mosaic_0001>
module attributes {stable_mosaic.version = 11 : i64} {
  func.func @dino_last_layer_kernel(%arg0: i32, %arg1: i32, %arg2: memref<8x128xbf16, #tpu.memory_space<vmem>>, %arg3: memref<128x128xbf16, #tpu.memory_space<vmem>>, %arg4: memref<8x128xf32, #tpu.memory_space<vmem>>) attributes {dimension_semantics = [#tpu.dimension_semantics<parallel>, #tpu.dimension_semantics<parallel>], iteration_bounds = array<i64: 4, 2>, scalar_prefetch = 0 : i64, scratch_operands = 0 : i64, tpu.core_type = #tpu.core_type<tc>, window_params = [{transform_indices = @transform_0, window_bounds = array<i64: 8, 128>}, {transform_indices = @transform_1, window_bounds = array<i64: 128, 128>}, {transform_indices = @transform_2, window_bounds = array<i64: 8, 128>}]} {
    %c0 = arith.constant 0 : index
    %c0_0 = arith.constant 0 : index
    %0 = vector.load %arg2[%c0, %c0_0] : memref<8x128xbf16, #tpu.memory_space<vmem>>, vector<8x128xbf16>
    %c0_1 = arith.constant 0 : index
    %c0_2 = arith.constant 0 : index
    %1 = vector.load %arg3[%c0_1, %c0_2] : memref<128x128xbf16, #tpu.memory_space<vmem>>, vector<128x128xbf16>
    %cst = arith.constant dense<0.000000e+00> : vector<8x128xf32>
    %2 = tpu.matmul %0, %1, %cst {dimension_numbers = #tpu.dot_dimension_numbers<[1], [0], [0], [1], [0, 0, 1, 1], [], []>} : vector<8x128xbf16>, vector<128x128xbf16>, vector<8x128xf32> -> vector<8x128xf32>
    %c0_3 = arith.constant 0 : index
    %c0_4 = arith.constant 0 : index
    %3 = vector.load %arg4[%c0_3, %c0_4] : memref<8x128xf32, #tpu.memory_space<vmem>>, vector<8x128xf32>
    tpu.vector_store %arg4[%c0_3, %c0_4], %2 {strides = array<i32>} : memref<8x128xf32, #tpu.memory_space<vmem>>, vector<8x128xf32>,
    return
  }
  func.func @transform_0(%arg0: i32, %arg1: i32) -> (i32, i32) {
    %c0_i32 = arith.constant 0 : i32
    %c0_i32_0 = arith.constant 0 : i32
    return %arg1, %c0_i32 : i32, i32
  }
  func.func @transform_1(%arg0: i32, %arg1: i32) -> (i32, i32) {
    %c0_i32 = arith.constant 0 : i32
    %c0_i32_0 = arith.constant 0 : i32
    return %c0_i32, %arg0 : i32, i32
  }
  func.func @transform_2(%arg0: i32, %arg1: i32) -> (i32, i32) {
    %c0_i32 = arith.constant 0 : i32
    return %arg1, %arg0 : i32, i32
  }
}

module attributes {stable_mosaic.version = 11 : i64} {
  func.func @dino_mlp_kernel(%arg0: i32, %arg1: memref<8x128xbf16, #tpu.memory_space<vmem>>, %arg2: memref<128x256xbf16, #tpu.memory_space<vmem>>, %arg3: memref<1x256xf32, #tpu.memory_space<vmem>>, %arg4: memref<256x256xbf16, #tpu.memory_space<vmem>>, %arg5: memref<1x256xf32, #tpu.memory_space<vmem>>, %arg6: memref<256x128xbf16, #tpu.memory_space<vmem>>, %arg7: memref<1x128xf32, #tpu.memory_space<vmem>>, %arg8: memref<8x128xbf16, #tpu.memory_space<vmem>>) attributes {dimension_semantics = [#tpu.dimension_semantics<parallel>], iteration_bounds = array<i64: 2>, scalar_prefetch = 0 : i64, scratch_operands = 0 : i64, tpu.core_type = #tpu.core_type<tc>, window_params = [{transform_indices = @transform_0, window_bounds = array<i64: 8, 128>}, {pipeline_mode = #tpu.pipeline_mode<synchronous>, transform_indices = @transform_1, window_bounds = array<i64: 128, 256>}, {pipeline_mode = #tpu.pipeline_mode<synchronous>, transform_indices = @transform_2, window_bounds = array<i64: 1, 256>}, {pipeline_mode = #tpu.pipeline_mode<synchronous>, transform_indices = @transform_3, window_bounds = array<i64: 256, 256>}, {pipeline_mode = #tpu.pipeline_mode<synchronous>, transform_indices = @transform_4, window_bounds = array<i64: 1, 256>}, {pipeline_mode = #tpu.pipeline_mode<synchronous>, transform_indices = @transform_5, window_bounds = array<i64: 256, 128>}, {pipeline_mode = #tpu.pipeline_mode<synchronous>, transform_indices = @transform_6, window_bounds = array<i64: 1, 128>}, {transform_indices = @transform_7, window_bounds = array<i64: 8, 128>}]} {
    %c0 = arith.constant 0 : index
    %c0_0 = arith.constant 0 : index
    %0 = vector.load %arg1[%c0, %c0_0] : memref<8x128xbf16, #tpu.memory_space<vmem>>, vector<8x128xbf16>
    %c0_1 = arith.constant 0 : index
    %c0_2 = arith.constant 0 : index
    %1 = vector.load %arg2[%c0_1, %c0_2] : memref<128x256xbf16, #tpu.memory_space<vmem>>, vector<128x256xbf16>
    %cst = arith.constant dense<0.000000e+00> : vector<8x256xf32>
    %2 = tpu.matmul %0, %1, %cst {dimension_numbers = #tpu.dot_dimension_numbers<[1], [0], [0], [1], [0, 0, 1, 1], [], []>} : vector<8x128xbf16>, vector<128x256xbf16>, vector<8x256xf32> -> vector<8x256xf32>
    %c0_3 = arith.constant 0 : index
    %c0_4 = arith.constant 0 : index
    %3 = vector.load %arg3[%c0_3, %c0_4] : memref<1x256xf32, #tpu.memory_space<vmem>>, vector<1x256xf32>
    %4 = vector.broadcast %3 : vector<1x256xf32> to vector<8x256xf32>
    %5 = arith.addf %2, %4 : vector<8x256xf32>
    %cst_5 = arith.constant 5.000000e-01 : f32
    %6 = vector.broadcast %cst_5 : f32 to vector<8x256xf32>
    %7 = arith.mulf %6, %5 : vector<8x256xf32>
    %cst_6 = arith.constant 1.41421354 : f32
    %8 = vector.broadcast %cst_6 : f32 to vector<8x256xf32>
    %9 = arith.divf %5, %8 : vector<8x256xf32>
    %10 = math.absf %9 : vector<8x256xf32>
    %cst_7 = arith.constant 0.327591091 : f32
    %11 = vector.broadcast %cst_7 : f32 to vector<8x256xf32>
    %12 = arith.mulf %11, %10 : vector<8x256xf32>
    %cst_8 = arith.constant 1.000000e+00 : f32
    %13 = vector.broadcast %cst_8 : f32 to vector<8x256xf32>
    %14 = arith.addf %13, %12 : vector<8x256xf32>
    %cst_9 = arith.constant 1.000000e+00 : f32
    %15 = vector.broadcast %cst_9 : f32 to vector<8x256xf32>
    %16 = arith.divf %15, %14 : vector<8x256xf32>
    %cst_10 = arith.constant 1.06140542 : f32
    %17 = vector.broadcast %cst_10 : f32 to vector<8x256xf32>
    %18 = arith.mulf %17, %16 : vector<8x256xf32>
    %cst_11 = arith.constant -1.45315206 : f32
    %19 = vector.broadcast %cst_11 : f32 to vector<8x256xf32>
    %20 = arith.addf %18, %19 : vector<8x256xf32>
    %21 = arith.mulf %20, %16 : vector<8x256xf32>
    %cst_12 = arith.constant 1.42141378 : f32
    %22 = vector.broadcast %cst_12 : f32 to vector<8x256xf32>
    %23 = arith.addf %21, %22 : vector<8x256xf32>
    %24 = arith.mulf %23, %16 : vector<8x256xf32>
    %cst_13 = arith.constant -0.284496725 : f32
    %25 = vector.broadcast %cst_13 : f32 to vector<8x256xf32>
    %26 = arith.addf %24, %25 : vector<8x256xf32>
    %27 = arith.mulf %26, %16 : vector<8x256xf32>
    %cst_14 = arith.constant 0.254829586 : f32
    %28 = vector.broadcast %cst_14 : f32 to vector<8x256xf32>
    %29 = arith.addf %27, %28 : vector<8x256xf32>
    %30 = arith.mulf %29, %16 : vector<8x256xf32>
    %cst_15 = arith.constant 0.000000e+00 : f32
    %31 = vector.broadcast %cst_15 : f32 to vector<8x256xf32>
    %32 = arith.subf %31, %10 : vector<8x256xf32>
    %33 = arith.mulf %32, %10 : vector<8x256xf32>
    %34 = math.exp %33 : vector<8x256xf32>
    %35 = arith.mulf %30, %34 : vector<8x256xf32>
    %cst_16 = arith.constant 1.000000e+00 : f32
    %36 = vector.broadcast %cst_16 : f32 to vector<8x256xf32>
    %37 = arith.subf %36, %35 : vector<8x256xf32>
    %cst_17 = arith.constant 0.000000e+00 : f32
    %38 = vector.broadcast %cst_17 : f32 to vector<8x256xf32>
    %39 = arith.cmpf oge, %9, %38 : vector<8x256xf32>
    %cst_18 = arith.constant 0.000000e+00 : f32
    %40 = vector.broadcast %cst_18 : f32 to vector<8x256xf32>
    %41 = arith.subf %40, %37 : vector<8x256xf32>
    %42 = arith.select %39, %37, %41 : vector<8x256xi1>, vector<8x256xf32>
    %cst_19 = arith.constant 1.000000e+00 : f32
    %43 = vector.broadcast %cst_19 : f32 to vector<8x256xf32>
    %44 = arith.addf %43, %42 : vector<8x256xf32>
    %45 = arith.mulf %7, %44 : vector<8x256xf32>
    %46 = arith.truncf %45 : vector<8x256xf32> to vector<8x256xbf16>
    %c0_20 = arith.constant 0 : index
    %c0_21 = arith.constant 0 : index
    %47 = vector.load %arg4[%c0_20, %c0_21] : memref<256x256xbf16, #tpu.memory_space<vmem>>, vector<256x256xbf16>
    %cst_22 = arith.constant dense<0.000000e+00> : vector<8x256xf32>
    %48 = tpu.matmul %46, %47, %cst_22 {dimension_numbers = #tpu.dot_dimension_numbers<[1], [0], [0], [1], [0, 0, 1, 1], [], []>} : vector<8x256xbf16>, vector<256x256xbf16>, vector<8x256xf32> -> vector<8x256xf32>
    %c0_23 = arith.constant 0 : index
    %c0_24 = arith.constant 0 : index
    %49 = vector.load %arg5[%c0_23, %c0_24] : memref<1x256xf32, #tpu.memory_space<vmem>>, vector<1x256xf32>
    %50 = vector.broadcast %49 : vector<1x256xf32> to vector<8x256xf32>
    %51 = arith.addf %48, %50 : vector<8x256xf32>
    %cst_25 = arith.constant 5.000000e-01 : f32
    %52 = vector.broadcast %cst_25 : f32 to vector<8x256xf32>
    %53 = arith.mulf %52, %51 : vector<8x256xf32>
    %cst_26 = arith.constant 1.41421354 : f32
    %54 = vector.broadcast %cst_26 : f32 to vector<8x256xf32>
    %55 = arith.divf %51, %54 : vector<8x256xf32>
    %56 = math.absf %55 : vector<8x256xf32>
    %cst_27 = arith.constant 0.327591091 : f32
    %57 = vector.broadcast %cst_27 : f32 to vector<8x256xf32>
    %58 = arith.mulf %57, %56 : vector<8x256xf32>
    %cst_28 = arith.constant 1.000000e+00 : f32
    %59 = vector.broadcast %cst_28 : f32 to vector<8x256xf32>
    %60 = arith.addf %59, %58 : vector<8x256xf32>
    %cst_29 = arith.constant 1.000000e+00 : f32
    %61 = vector.broadcast %cst_29 : f32 to vector<8x256xf32>
    %62 = arith.divf %61, %60 : vector<8x256xf32>
    %cst_30 = arith.constant 1.06140542 : f32
    %63 = vector.broadcast %cst_30 : f32 to vector<8x256xf32>
    %64 = arith.mulf %63, %62 : vector<8x256xf32>
    %cst_31 = arith.constant -1.45315206 : f32
    %65 = vector.broadcast %cst_31 : f32 to vector<8x256xf32>
    %66 = arith.addf %64, %65 : vector<8x256xf32>
    %67 = arith.mulf %66, %62 : vector<8x256xf32>
    %cst_32 = arith.constant 1.42141378 : f32
    %68 = vector.broadcast %cst_32 : f32 to vector<8x256xf32>
    %69 = arith.addf %67, %68 : vector<8x256xf32>
    %70 = arith.mulf %69, %62 : vector<8x256xf32>
    %cst_33 = arith.constant -0.284496725 : f32
    %71 = vector.broadcast %cst_33 : f32 to vector<8x256xf32>
    %72 = arith.addf %70, %71 : vector<8x256xf32>
    %73 = arith.mulf %72, %62 : vector<8x256xf32>
    %cst_34 = arith.constant 0.254829586 : f32
    %74 = vector.broadcast %cst_34 : f32 to vector<8x256xf32>
    %75 = arith.addf %73, %74 : vector<8x256xf32>
    %76 = arith.mulf %75, %62 : vector<8x256xf32>
    %cst_35 = arith.constant 0.000000e+00 : f32
    %77 = vector.broadcast %cst_35 : f32 to vector<8x256xf32>
    %78 = arith.subf %77, %56 : vector<8x256xf32>
    %79 = arith.mulf %78, %56 : vector<8x256xf32>
    %80 = math.exp %79 : vector<8x256xf32>
    %81 = arith.mulf %76, %80 : vector<8x256xf32>
    %cst_36 = arith.constant 1.000000e+00 : f32
    %82 = vector.broadcast %cst_36 : f32 to vector<8x256xf32>
    %83 = arith.subf %82, %81 : vector<8x256xf32>
    %cst_37 = arith.constant 0.000000e+00 : f32
    %84 = vector.broadcast %cst_37 : f32 to vector<8x256xf32>
    %85 = arith.cmpf oge, %55, %84 : vector<8x256xf32>
    %cst_38 = arith.constant 0.000000e+00 : f32
    %86 = vector.broadcast %cst_38 : f32 to vector<8x256xf32>
    %87 = arith.subf %86, %83 : vector<8x256xf32>
    %88 = arith.select %85, %83, %87 : vector<8x256xi1>, vector<8x256xf32>
    %cst_39 = arith.constant 1.000000e+00 : f32
    %89 = vector.broadcast %cst_39 : f32 to vector<8x256xf32>
    %90 = arith.addf %89, %88 : vector<8x256xf32>
    %91 = arith.mulf %53, %90 : vector<8x256xf32>
    %92 = arith.truncf %91 : vector<8x256xf32> to vector<8x256xbf16>
    %c0_40 = arith.constant 0 : index
    %c0_41 = arith.constant 0 : index
    %93 = vector.load %arg6[%c0_40, %c0_41] : memref<256x128xbf16, #tpu.memory_space<vmem>>, vector<256x128xbf16>
    %cst_42 = arith.constant dense<0.000000e+00> : vector<8x128xf32>
    %94 = tpu.matmul %92, %93, %cst_42 {dimension_numbers = #tpu.dot_dimension_numbers<[1], [0], [0], [1], [0, 0, 1, 1], [], []>} : vector<8x256xbf16>, vector<256x128xbf16>, vector<8x128xf32> -> vector<8x128xf32>
    %c0_43 = arith.constant 0 : index
    %c0_44 = arith.constant 0 : index
    %95 = vector.load %arg7[%c0_43, %c0_44] : memref<1x128xf32, #tpu.memory_space<vmem>>, vector<1x128xf32>
    %96 = vector.broadcast %95 : vector<1x128xf32> to vector<8x128xf32>
    %97 = arith.addf %94, %96 : vector<8x128xf32>
    %98 = arith.mulf %97, %97 : vector<8x128xf32>
    %cst_45 = arith.constant dense<0.000000e+00> : vector<8xf32>
    %99 = vector.multi_reduction <add>, %98, %cst_45 [1] : vector<8x128xf32> to vector<8xf32>
    %100 = vector.shape_cast %99 : vector<8xf32> to vector<8x1xf32>
    %cst_46 = arith.constant 1.000000e-24 : f32
    %101 = vector.broadcast %cst_46 : f32 to vector<8x1xf32>
    %102 = arith.maximumf %100, %101 : vector<8x1xf32>
    %103 = math.rsqrt %102 : vector<8x1xf32>
    %104 = vector.broadcast %103 : vector<8x1xf32> to vector<8x128xf32>
    %105 = arith.mulf %97, %104 : vector<8x128xf32>
    %106 = arith.truncf %105 : vector<8x128xf32> to vector<8x128xbf16>
    %c0_47 = arith.constant 0 : index
    %c0_48 = arith.constant 0 : index
    %107 = vector.load %arg8[%c0_47, %c0_48] : memref<8x128xbf16, #tpu.memory_space<vmem>>, vector<8x128xbf16>
    tpu.vector_store %arg8[%c0_47, %c0_48], %106 {strides = array<i32>} : memref<8x128xbf16, #tpu.memory_space<vmem>>, vector<8x128xbf16>,
    return
  }
  func.func @transform_0(%arg0: i32) -> (i32, i32) {
    %c0_i32 = arith.constant 0 : i32
    %c0_i32_0 = arith.constant 0 : i32
    return %arg0, %c0_i32 : i32, i32
  }
  func.func @transform_1(%arg0: i32) -> (i32, i32) {
    %c0_i32 = arith.constant 0 : i32
    %c0_i32_0 = arith.constant 0 : i32
    %c0_i32_1 = arith.constant 0 : i32
    return %c0_i32, %c0_i32_0 : i32, i32
  }
  func.func @transform_2(%arg0: i32) -> (i32, i32) {
    %c0_i32 = arith.constant 0 : i32
    %c0_i32_0 = arith.constant 0 : i32
    %c0_i32_1 = arith.constant 0 : i32
    return %c0_i32, %c0_i32_0 : i32, i32
  }
  func.func @transform_3(%arg0: i32) -> (i32, i32) {
    %c0_i32 = arith.constant 0 : i32
    %c0_i32_0 = arith.constant 0 : i32
    %c0_i32_1 = arith.constant 0 : i32
    return %c0_i32, %c0_i32_0 : i32, i32
  }
  func.func @transform_4(%arg0: i32) -> (i32, i32) {
    %c0_i32 = arith.constant 0 : i32
    %c0_i32_0 = arith.constant 0 : i32
    %c0_i32_1 = arith.constant 0 : i32
    return %c0_i32, %c0_i32_0 : i32, i32
  }
  func.func @transform_5(%arg0: i32) -> (i32, i32) {
    %c0_i32 = arith.constant 0 : i32
    %c0_i32_0 = arith.constant 0 : i32
    %c0_i32_1 = arith.constant 0 : i32
    return %c0_i32, %c0_i32_0 : i32, i32
  }
  func.func @transform_6(%arg0: i32) -> (i32, i32) {
    %c0_i32 = arith.constant 0 : i32
    %c0_i32_0 = arith.constant 0 : i32
    %c0_i32_1 = arith.constant 0 : i32
    return %c0_i32, %c0_i32_0 : i32, i32
  }
  func.func @transform_7(%arg0: i32) -> (i32, i32) {
    %c0_i32 = arith.constant 0 : i32
    %c0_i32_0 = arith.constant 0 : i32
    return %arg0, %c0_i32 : i32, i32
  }
}

</mosaic_0001>

<llo_original>
// kernel: dino_head_forward.3
$region0: #{dino_head_forward.3}
  #allocation0 [shape = 'u32[]', space=smem, size = 0x4, offset = 0x4, fixed_abs, tag = 'smem constant byte address 0x4 - core index']
  #allocation1 [shape = 'u32[144,128]{1,0:T(1,128)}', space=vmem, size = 0x12000, scoped, tag = 'internal scratch']
  %s0 = inlined_call_operand.hbm [shape: bf16[16,128], index: 0, kind: input, shape index: {}]
  %s1 = inlined_call_operand.hbm [shape: bf16[128,512], index: 1, kind: input, shape index: {}]
  %s2 = inlined_call_operand.hbm [shape: f32[16,512], index: 2, kind: output, shape index: {}]
  %s3 = sld [smem:[#allocation0]]
  $region49: #{dino_head_forward.3} parent=0
    _
  %s5 = ssub.s32 1, %s3
  %s6 = scalar_select 0, %s5, %s3
  $region1: #{dino_head_forward.3} parent=0
    #allocation2 [shape = 'u8[4096]{0}', space=vmem, size = 0x1000, scoped, tag = 'input window, operand 0']
    #allocation3 [shape = 's32[2]{0}', space=sflag, size = 0x8, scoped, tag = 'scoped memory for dino_head_forward.3']
    #allocation4 [shape = 's32[2]{0}', space=sflag, size = 0x8, scoped, tag = 'scoped memory for dino_head_forward.3']
    #allocation5 [shape = 'u8[65536]{0}', space=vmem, size = 0x10000, scoped, tag = 'input window, operand 1']
    #allocation6 [shape = 's32[2]{0}', space=sflag, size = 0x8, scoped, tag = 'scoped memory for dino_head_forward.3']
    #allocation7 [shape = 'u8[8192]{0}', space=vmem, size = 0x2000, scoped, tag = 'output window, operand 0']
    %7 = vsyncpa [#allocation3], 0
    %s8 = scalar_lea.sflag [#allocation3], 1
    %9 = vsyncpa %s8, 0
    %10 = vsyncpa [#allocation6], 0
    %s11 = scalar_lea.sflag [#allocation6], 1
    %12 = vsyncpa %s11, 0
    %13 = vsyncpa [#allocation4], 0
    %s14 = scalar_lea.sflag [#allocation4], 1
    %15 = vsyncpa %s14, 0
    loop: start=0, step=1, limit=10
    $region2: #{dino_head_forward.3} parent=1 // loop_pre_header
      _
    $region3: #{dino_head_forward.3} parent=1 // loop_header
      %s17 = sphi 0, %s21
      %p18 = scmp.ge.s32.totalorder %s17, 10
      %s24 = sphi 0, %s36
      %s25 = sphi 0, %s32
      %s26 = sphi 0, %s24
      %s27 = sphi 0, %s25
      %s28 = sphi 0, %s26
      %s29 = sphi 0, %s27
      %s39 = sphi 0, %s41
      %s42 = sphi 0, %s39
      %s43 = sphi 0, %s42
      %s59 = sphi 0, %s43
      %s65 = sphi 0, %s67
      %s68 = sphi 0, %s65
      %s69 = sphi 0, %s68
      %s85 = sphi 0, %s69
      %s93 = sphi 0, %s95
      %s96 = sphi 0, %s93
      %s97 = sphi 0, %s96
      %s113 = sphi 0, %s97
    $region4: #{dino_head_forward.3} parent=1 // loop_header_branch
      %20 = sbr.rel (%p18) target = $region8
    $region5: #{dino_head_forward.3} parent=1 // loop_body
      %s22 = ssub.s32 %s17, 1
      %s23 = ssub.s32 %s17, 2
      %s30 = sadd.s32 1, %s25
      %p31 = scmp.ge.s32.totalorder %s30, 2
      %s32 = scalar_select %p31, 0, %s30
      %s33 = sadd.s32 1, %s24
      %s34 = scalar_select %p31, %s33, %s24
      %p35 = scmp.ge.s32.totalorder %s34, 4
      %s36 = scalar_select %p35, 0, %s34
      %s37 = ssub.s32 %s25, %s32
      %p38 = scmp.eq.s32.totalorder %s37, 0
      %s40 = sadd.s32 %s39, 1
      %s41 = scalar_select %p38, %s39, %s40
      %p44 = pneg %p38
      %p45 = scmp.eq.s32.totalorder %s17, 7
      %p46 = por %p44, %p45
      %p47 = scmp.ne.s32.totalorder %s39, %s42
      %p48 = scmp.eq.s32.totalorder %s17, 0
      %p49 = por %p47, %p48
      %p50 = scmp.ne.s32.totalorder %s39, %s42
      %p51 = scmp.eq.s32.totalorder %s22, 7
      %p52 = por %p50, %p51
      %p53 = scmp.ne.s32.totalorder %s42, %s43
      %p54 = scmp.eq.s32.totalorder %s22, 0
      %p55 = por %p53, %p54
      %p56 = scmp.ne.s32.totalorder %s42, %s43
      %p57 = scmp.eq.s32.totalorder %s23, 7
      %p58 = por %p56, %p57
      %p60 = scmp.ne.s32.totalorder %s43, %s59
      %p61 = scmp.eq.s32.totalorder %s23, 0
      %p62 = por %p60, %p61
      %s63 = ssub.s32 %s24, %s36
      %p64 = scmp.eq.s32.totalorder %s63, 0
      %s66 = sadd.s32 %s65, 1
      %s67 = scalar_select %p64, %s65, %s66
      %p70 = pneg %p64
      %p71 = scmp.eq.s32.totalorder %s17, 7
      %p72 = por %p70, %p71
      %p73 = scmp.ne.s32.totalorder %s65, %s68
      %p74 = scmp.eq.s32.totalorder %s17, 0
      %p75 = por %p73, %p74
      %p76 = scmp.ne.s32.totalorder %s65, %s68
      %p77 = scmp.eq.s32.totalorder %s22, 7
      %p78 = por %p76, %p77
      %p79 = scmp.ne.s32.totalorder %s68, %s69
      %p80 = scmp.eq.s32.totalorder %s22, 0
      %p81 = por %p79, %p80
      %p82 = scmp.ne.s32.totalorder %s68, %s69
      %p83 = scmp.eq.s32.totalorder %s23, 7
      %p84 = por %p82, %p83
      %p86 = scmp.ne.s32.totalorder %s69, %s85
      %p87 = scmp.eq.s32.totalorder %s23, 0
      %p88 = por %p86, %p87
      %s89 = ssub.s32 %s25, %s32
      %s90 = ssub.s32 %s24, %s36
      %s91 = sor.u32 %s89, %s90
      %p92 = scmp.eq.s32.totalorder %s91, 0
      %s94 = sadd.s32 %s93, 1
      %s95 = scalar_select %p92, %s93, %s94
      %p98 = pneg %p92
      %p99 = scmp.eq.s32.totalorder %s17, 7
      %p100 = por %p98, %p99
      %p101 = scmp.ne.s32.totalorder %s93, %s96
      %p102 = scmp.eq.s32.totalorder %s17, 0
      %p103 = por %p101, %p102
      %p104 = scmp.ne.s32.totalorder %s93, %s96
      %p105 = scmp.eq.s32.totalorder %s22, 7
      %p106 = por %p104, %p105
      %p107 = scmp.ne.s32.totalorder %s96, %s97
      %p108 = scmp.eq.s32.totalorder %s22, 0
      %p109 = por %p107, %p108
      %p110 = scmp.ne.s32.totalorder %s96, %s97
      %p111 = scmp.eq.s32.totalorder %s23, 7
      %p112 = por %p110, %p111
      %p114 = scmp.ne.s32.totalorder %s97, %s113
      %p115 = scmp.eq.s32.totalorder %s23, 0
      %p116 = por %p114, %p115
      %p117 = scmp.le.s32.totalorder 1, %s17
      %p118 = scmp.lt.s32.totalorder %s17, 9
      %p119 = pnand %p117, %p118
      %p120 = pneg %p119
      // Predicated region
      $region9: #{dino_head_forward.3} parent=5 // pred_check
        _
      $region10: #{dino_head_forward.3} parent=5 // pred_check_branch
        %122 = sbr.rel (%p119) target = $region12
      $region11: #{dino_head_forward.3} parent=5 // pred_region
        %s123 = ssub.s32 %s17, 1
      $region12: #{dino_head_forward.3} parent=5 // pred_fallthru
        _
      %p124 = scmp.lt.s32.totalorder %s17, 8
      // Predicated region
      $region13: #{dino_head_forward.3} parent=5 // pred_check
        %p125 = pneg %p124
      $region14: #{dino_head_forward.3} parent=5 // pred_check_branch
        %127 = sbr.rel (%p125) target = $region16
      $region15: #{dino_head_forward.3} parent=5 // pred_region
        // Predicated region
        $region17: #{dino_head_forward.3} parent=15 // pred_check
          %p128 = pneg %p49
        $region18: #{dino_head_forward.3} parent=15 // pred_check_branch
          %130 = sbr.rel (%p128) target = $region20
        $region19: #{dino_head_forward.3} parent=15 // pred_region
          %s131 = sand.u32 %s39, 1
          %s132 = scalar_lea.sflag [#allocation3], %s131
          %s133 = sand.u32 %s39, 1
          %s134 = smul.addr %s133, 4
          %s135 = scalar_lea.vmem [#allocation2], %s134
          %s137 = ssub.s32 64, 64
          %138 = vsyncadd %s132, %s137
          %s139 = smul.addr %s25, 64
          %s140 = scalar_lea.hbm %s0, %s139
          %s142 = sshll.u32 %s135, 4
          %s143 = int_to_ptr.vmem [resolvable:$true] %s142
          %145 = dma.hbm_to_vmem [thread:$0]  %s140, 64, %s143, %s132
        $region20: #{dino_head_forward.3} parent=15 // pred_fallthru
          _
        // Predicated region
        $region21: #{dino_head_forward.3} parent=15 // pred_check
          %p146 = pneg %p75
        $region22: #{dino_head_forward.3} parent=15 // pred_check_branch
          %148 = sbr.rel (%p146) target = $region24
        $region23: #{dino_head_forward.3} parent=15 // pred_region
          %s149 = sand.u32 %s65, 1
          %s150 = scalar_lea.sflag [#allocation6], %s149
          %s151 = sand.u32 %s65, 1
          %s152 = smul.addr %s151, 64
          %s153 = scalar_lea.vmem [#allocation5], %s152
          %s155 = ssub.s32 1024, 1024
          %156 = vsyncadd %s150, %s155
          %s157 = smul.addr %s24, 64
          %s158 = scalar_lea.hbm %s1, %s157
          %s159 = sshll.u32 %s153, 4
          %s160 = int_to_ptr.vmem [resolvable:$true] %s159
          %165 = dma.hbm_to_vmem [thread:$0]  %s158, 1024, %s160, %s150, 256, 64, 4
        $region24: #{dino_head_forward.3} parent=15 // pred_fallthru
          _
      $region16: #{dino_head_forward.3} parent=5 // pred_fallthru
        _
      %p166 = scmp.le.s32.totalorder 1, %s17
      %p167 = scmp.lt.s32.totalorder %s17, 9
      %p168 = pnand %p166, %p167
      %p169 = pneg %p168
      // Predicated region
      $region25: #{dino_head_forward.3} parent=5 // pred_check
        _
      $region26: #{dino_head_forward.3} parent=5 // pred_check_branch
        %171 = sbr.rel (%p168) target = $region28
      $region27: #{dino_head_forward.3} parent=5 // pred_region
        %s172 = ssub.s32 %s17, 1
        %s173 = sand.u32 %s42, 1
        %s174 = scalar_lea.sflag [#allocation3], %s173
        %s175 = sand.u32 %s42, 1
        %s176 = smul.addr %s175, 4
        %s177 = scalar_lea.vmem [#allocation2], %s176
        // Predicated region
        $region29: #{dino_head_forward.3} parent=27 // pred_check
          %p178 = pneg %p55
        $region30: #{dino_head_forward.3} parent=27 // pred_check_branch
          %180 = sbr.rel (%p178) target = $region32
        $region31: #{dino_head_forward.3} parent=27 // pred_region
          %181 = dma.done %s174, 64
        $region32: #{dino_head_forward.3} parent=27 // pred_fallthru
          _
        %s182 = sand.u32 %s68, 1
        %s183 = scalar_lea.sflag [#allocation6], %s182
        %s184 = sand.u32 %s68, 1
        %s185 = smul.addr %s184, 64
        %s186 = scalar_lea.vmem [#allocation5], %s185
        // Predicated region
        $region33: #{dino_head_forward.3} parent=27 // pred_check
          %p187 = pneg %p81
        $region34: #{dino_head_forward.3} parent=27 // pred_check_branch
          %189 = sbr.rel (%p187) target = $region36
        $region35: #{dino_head_forward.3} parent=27 // pred_region
          %190 = dma.done %s183, 1024
        $region36: #{dino_head_forward.3} parent=27 // pred_fallthru
          _
        %s191 = sand.u32 %s42, 1
        %s192 = scalar_lea.sflag [#allocation3], %s191
        %s193 = sand.u32 %s42, 1
        %s194 = smul.addr %s193, 4
        %s195 = scalar_lea.vmem [#allocation2], %s194
        %p196 = pneg %p55
        %p197 = pneg %p52
        %s198 = sand.u32 %s68, 1
        %s199 = scalar_lea.sflag [#allocation6], %s198
        %s200 = sand.u32 %s68, 1
        %s201 = smul.addr %s200, 64
        %s202 = scalar_lea.vmem [#allocation5], %s201
        %p203 = pneg %p81
        %p204 = pneg %p78
        %p205 = pneg %p109
        %p206 = pneg %p106
        %s207 = sand.u32 %s96, 1
        %s208 = scalar_lea.sflag [#allocation4], %s207
        %s209 = sand.u32 %s96, 1
        %s210 = smul.addr %s209, 8
        %s211 = scalar_lea.vmem [#allocation7], %s210
        %v213 = vld [vmem:[%s177] sm:$0xf]
        %v214 = vld [vmem:[%s186] sm:$0xf]
        %v215 = vld [vmem:[%s186 + $0x4] sm:$0xf]
        %v216 = vld [vmem:[%s186 + $0x8] sm:$0xf]
        %v217 = vld [vmem:[%s186 + $0xc] sm:$0xf]
        %v218 = vld [vmem:[%s186 + $0x10] sm:$0xf]
        %v219 = vld [vmem:[%s186 + $0x14] sm:$0xf]
        %v220 = vld [vmem:[%s186 + $0x18] sm:$0xf]
        %v221 = vld [vmem:[%s186 + $0x1c] sm:$0xf]
        %v222 = vld [vmem:[%s186 + $0x20] sm:$0xf]
        %v223 = vld [vmem:[%s186 + $0x24] sm:$0xf]
        %v224 = vld [vmem:[%s186 + $0x28] sm:$0xf]
        %v225 = vld [vmem:[%s186 + $0x2c] sm:$0xf]
        %v226 = vld [vmem:[%s186 + $0x30] sm:$0xf]
        %v227 = vld [vmem:[%s186 + $0x34] sm:$0xf]
        %v228 = vld [vmem:[%s186 + $0x38] sm:$0xf]
        %v229 = vld [vmem:[%s186 + $0x3c] sm:$0xf]
        %v246 = vunpack.c.l.b16 %v214
        %v247 = vunpack.c.l.b16 %v215
        %v248 = vunpack.c.l.b16 %v216
        %v249 = vunpack.c.l.b16 %v217
        %v250 = vunpack.c.l.b16 %v218
        %v251 = vunpack.c.l.b16 %v219
        %v252 = vunpack.c.l.b16 %v220
        %v253 = vunpack.c.l.b16 %v221
        %v254 = vunpack.c.l.b16 %v222
        %v255 = vunpack.c.l.b16 %v223
        %v256 = vunpack.c.l.b16 %v224
        %v257 = vunpack.c.l.b16 %v225
        %v258 = vunpack.c.l.b16 %v226
        %v259 = vunpack.c.l.b16 %v227
        %v260 = vunpack.c.l.b16 %v228
        %v261 = vunpack.c.l.b16 %v229
        %v262 = vpack.c.b16 %v247, %v246
        %v263 = vpack.c.b16 %v249, %v248
        %v264 = vpack.c.b16 %v251, %v250
        %v265 = vpack.c.b16 %v253, %v252
        %v266 = vpack.c.b16 %v255, %v254
        %v267 = vpack.c.b16 %v257, %v256
        %v268 = vpack.c.b16 %v259, %v258
        %v269 = vpack.c.b16 %v261, %v260
        %278 = vmatprep.subr.bf16.mxu0 0
        %279 = vmatpush1.bf16.msra.mxu0 %v262
        %280 = vmatprep.subr.bf16.mxu0 0
        %281 = vmatpush1.bf16.msra.mxu0 %v263
        %282 = vmatprep.subr.bf16.mxu0 0
        %283 = vmatpush1.bf16.msra.mxu0 %v264
        %284 = vmatprep.subr.bf16.mxu0 0
        %285 = vmatpush1.bf16.msra.mxu0 %v265
        %286 = vmatprep.subr.bf16.mxu0 0
        %287 = vmatpush1.bf16.msra.mxu0 %v266
        %288 = vmatprep.subr.bf16.mxu0 0
        %289 = vmatpush1.bf16.msra.mxu0 %v267
        %290 = vmatprep.subr.bf16.mxu0 0
        %291 = vmatpush1.bf16.msra.mxu0 %v268
        %292 = vmatprep.subr.bf16.mxu0 0
        %293 = vmatpush1.bf16.msra.mxu0 %v269
        %294 = vmatprep.subr.bf16.mxu0 0
        %295 = vmatpush1.bf16.msra.mxu0 0
        %296 = vmatprep.subr.bf16.mxu0 0
        %297 = vmatpush1.bf16.msra.mxu0 0
        %298 = vmatprep.subr.bf16.mxu0 0
        %299 = vmatpush1.bf16.msra.mxu0 0
        %300 = vmatprep.subr.bf16.mxu0 0
        %301 = vmatpush1.bf16.msra.mxu0 0
        %302 = vmatprep.subr.bf16.mxu0 0
        %303 = vmatpush1.bf16.msra.mxu0 0
        %304 = vmatprep.subr.bf16.mxu0 0
        %305 = vmatpush1.bf16.msra.mxu0 0
        %306 = vmatprep.subr.bf16.mxu0 0
        %307 = vmatpush1.bf16.msra.mxu0 0
        %308 = vmatprep.subr.bf16.mxu0 0
        %309 = vmatpush1.bf16.msra.mxu0 0
        %310 = vmatprep.mubr.bf16.mxu0 0
        %311 = vmatmul.mubr.bf16.gmra.mrb[0].mxu0 %v213
        %v312 = vpop.f32.mrb[0].mxu0
        %v313 = vadd.f32 0.0, %v312
        %v314 = vpop.f32.mrb[0].mxu0
        %v315 = vpop.f32.mrb[0].mxu0
        %v316 = vpop.f32.mrb[0].mxu0
        %317 = vdwg.mxu0
        %318 = vst [vmem:[%s211] sm:$0xff] %v313
        %s319 = sand.u32 %s96, 1
        %s320 = scalar_lea.sflag [#allocation4], %s319
        %s321 = sand.u32 %s96, 1
        %s322 = smul.addr %s321, 8
        %s323 = scalar_lea.vmem [#allocation7], %s322
        // Predicated region
        $region37: #{dino_head_forward.3} parent=27 // pred_check
          %p324 = pneg %p106
        $region38: #{dino_head_forward.3} parent=27 // pred_check_branch
          %326 = sbr.rel (%p324) target = $region40
        $region39: #{dino_head_forward.3} parent=27 // pred_region
          %s328 = ssub.s32 128, 128
          %329 = vsyncadd %s320, %s328
          %s330 = smul.addr %s27, 4
          %s331 = sadd.s32 %s26, %s330
          %s332 = smul.addr %s331, 128
          %s333 = scalar_lea.hbm %s2, %s332
          %s335 = sshll.u32 %s323, 4
          %s336 = int_to_ptr.vmem [resolvable:$true] %s335
          %338 = dma.vmem_to_hbm [thread:$0]  %s336, 128, %s333, %s320
        $region40: #{dino_head_forward.3} parent=27 // pred_fallthru
          _
      $region28: #{dino_head_forward.3} parent=5 // pred_fallthru
        _
      %p339 = scmp.le.s32.totalorder 2, %s17
      // Predicated region
      $region41: #{dino_head_forward.3} parent=5 // pred_check
        %p340 = pneg %p339
      $region42: #{dino_head_forward.3} parent=5 // pred_check_branch
        %342 = sbr.rel (%p340) target = $region44
      $region43: #{dino_head_forward.3} parent=5 // pred_region
        %s343 = ssub.s32 %s17, 2
        // Predicated region
        $region45: #{dino_head_forward.3} parent=43 // pred_check
          %p344 = pneg %p112
        $region46: #{dino_head_forward.3} parent=43 // pred_check_branch
          %346 = sbr.rel (%p344) target = $region48
        $region47: #{dino_head_forward.3} parent=43 // pred_region
          %s347 = sand.u32 %s97, 1
          %s348 = scalar_lea.sflag [#allocation4], %s347
          %s349 = sand.u32 %s97, 1
          %s350 = smul.addr %s349, 8
          %s351 = scalar_lea.vmem [#allocation7], %s350
          %352 = dma.done %s348, 128
        $region48: #{dino_head_forward.3} parent=43 // pred_fallthru
          _
      $region44: #{dino_head_forward.3} parent=5 // pred_fallthru
        _
    $region6: #{dino_head_forward.3} parent=1 // loop_footer
      %s21 = sadd.s32 1, %s17
    $region7: #{dino_head_forward.3} parent=1 // loop_footer_branch
      %16 = sbr.rel target = $region3
    $region8: #{dino_head_forward.3} parent=1 // loop_exit
      _
    %353 = vsyncpa [#allocation3], 1
    %s354 = scalar_lea.sflag [#allocation3], 1
    %355 = vsyncpa %s354, 1
    %356 = vsyncpa [#allocation6], 1
    %s357 = scalar_lea.sflag [#allocation6], 1
    %358 = vsyncpa %s357, 1
    %359 = vsyncpa [#allocation4], 1
    %s360 = scalar_lea.sflag [#allocation4], 1
    %361 = vsyncpa %s360, 1

// kernel: dino_head_forward.2
$region0: #{dino_head_forward.2}
  #allocation0 [shape = 'u32[]', space=smem, size = 0x4, offset = 0x4, fixed_abs, tag = 'smem constant byte address 0x4 - core index']
  #allocation1 [shape = 'u32[144,128]{1,0:T(1,128)}', space=vmem, size = 0x12000, scoped, tag = 'internal scratch']
  %s0 = inlined_call_operand.hbm [shape: bf16[16,128], index: 0, kind: input, shape index: {}]
  %s1 = inlined_call_operand.hbm [shape: bf16[128,256], index: 1, kind: input, shape index: {}]
  %s2 = inlined_call_operand.hbm [shape: f32[1,256], index: 2, kind: input, shape index: {}]
  %s3 = inlined_call_operand.hbm [shape: bf16[256,256], index: 3, kind: input, shape index: {}]
  %s4 = inlined_call_operand.hbm [shape: f32[1,256], index: 4, kind: input, shape index: {}]
  %s5 = inlined_call_operand.hbm [shape: bf16[256,128], index: 5, kind: input, shape index: {}]
  %s6 = inlined_call_operand.hbm [shape: f32[1,128], index: 6, kind: input, shape index: {}]
  %s7 = inlined_call_operand.hbm [shape: bf16[16,128], index: 7, kind: output, shape index: {}]
  %s8 = sld [smem:[#allocation0]]
  $region89: #{dino_head_forward.2} parent=0
    _
  %s10 = ssub.s32 1, %s8
  %s11 = scalar_select 0, %s10, %s8
  $region1: #{dino_head_forward.2} parent=0
    #allocation2 [shape = 'u8[4096]{0}', space=vmem, size = 0x1000, scoped, tag = 'input window, operand 0']
    #allocation3 [shape = 's32[2]{0}', space=sflag, size = 0x8, scoped, tag = 'scoped memory for dino_head_forward.2']
    #allocation4 [shape = 's32[2]{0}', space=sflag, size = 0x8, scoped, tag = 'scoped memory for dino_head_forward.2']
    #allocation5 [shape = 'u8[65536]{0}', space=vmem, size = 0x10000, scoped, tag = 'input window, operand 1, single buffered']
    #allocation6 [shape = 's32[1]{0}', space=sflag, size = 0x4, scoped, tag = 'scoped memory for dino_head_forward.2']
    #allocation7 [shape = 'u8[1024]{0}', space=vmem, size = 0x400, scoped, tag = 'input window, operand 2, single buffered']
    #allocation8 [shape = 'u8[131072]{0}', space=vmem, size = 0x20000, scoped, tag = 'input window, operand 3, single buffered']
    #allocation9 [shape = 's32[1]{0}', space=sflag, size = 0x4, scoped, tag = 'scoped memory for dino_head_forward.2']
    #allocation10 [shape = 'u8[1024]{0}', space=vmem, size = 0x400, scoped, tag = 'input window, operand 4, single buffered']
    #allocation11 [shape = 'u8[65536]{0}', space=vmem, size = 0x10000, scoped, tag = 'input window, operand 5, single buffered']
    #allocation12 [shape = 's32[1]{0}', space=sflag, size = 0x4, scoped, tag = 'scoped memory for dino_head_forward.2']
    #allocation13 [shape = 'u8[512]{0}', space=vmem, size = 0x400, scoped, tag = 'input window, operand 6, single buffered']
    #allocation14 [shape = 'u8[4096]{0}', space=vmem, size = 0x1000, scoped, tag = 'output window, operand 0']
    %12 = vsyncpa [#allocation3], 0
    %s13 = scalar_lea.sflag [#allocation3], 1
    %14 = vsyncpa %s13, 0
    %15 = vsyncpa [#allocation6], 0
    %16 = vsyncpa [#allocation9], 0
    %17 = vsyncpa [#allocation12], 0
    %18 = vsyncpa [#allocation4], 0
    %s19 = scalar_lea.sflag [#allocation4], 1
    %20 = vsyncpa %s19, 0
    loop: start=0, step=1, limit=4
    $region2: #{dino_head_forward.2} parent=1 // loop_pre_header
      _
    $region3: #{dino_head_forward.2} parent=1 // loop_header
      %s22 = sphi 0, %s26
      %p23 = scmp.ge.s32.totalorder %s22, 4
      %s32 = sphi 0, %s34
      %s35 = sphi 0, %s32
      %s36 = sphi 0, %s35
      %s52 = sphi 0, %s36
      %s56 = sphi 0, %s56
      %s58 = sphi 0, %s56
      %s59 = sphi 0, %s58
      %s73 = sphi 0, %s59
      %s77 = sphi 0, %s77
      %s79 = sphi 0, %s77
      %s80 = sphi 0, %s79
      %s94 = sphi 0, %s80
      %s98 = sphi 0, %s98
      %s100 = sphi 0, %s98
      %s101 = sphi 0, %s100
      %s115 = sphi 0, %s101
      %s119 = sphi 0, %s119
      %s121 = sphi 0, %s119
      %s122 = sphi 0, %s121
      %s136 = sphi 0, %s122
      %s140 = sphi 0, %s140
      %s142 = sphi 0, %s140
      %s143 = sphi 0, %s142
      %s157 = sphi 0, %s143
      %s161 = sphi 0, %s161
      %s163 = sphi 0, %s161
      %s164 = sphi 0, %s163
      %s178 = sphi 0, %s164
      %s184 = sphi 0, %s186
      %s187 = sphi 0, %s184
      %s188 = sphi 0, %s187
      %s204 = sphi 0, %s188
    $region4: #{dino_head_forward.2} parent=1 // loop_header_branch
      %25 = sbr.rel (%p23) target = $region8
    $region5: #{dino_head_forward.2} parent=1 // loop_body
      %s27 = ssub.s32 %s22, 1
      %s28 = ssub.s32 %s22, 2
      %s29 = sadd.s32 %s22, 1
      %s30 = ssub.s32 %s22, %s29
      %p31 = scmp.eq.s32.totalorder %s30, 0
      %s33 = sadd.s32 %s32, 1
      %s34 = scalar_select %p31, %s32, %s33
      %p37 = pneg %p31
      %p38 = scmp.eq.s32.totalorder %s22, 1
      %p39 = por %p37, %p38
      %p40 = scmp.ne.s32.totalorder %s32, %s35
      %p41 = scmp.eq.s32.totalorder %s22, 0
      %p42 = por %p40, %p41
      %p43 = scmp.ne.s32.totalorder %s32, %s35
      %p44 = scmp.eq.s32.totalorder %s27, 1
      %p45 = por %p43, %p44
      %p46 = scmp.ne.s32.totalorder %s35, %s36
      %p47 = scmp.eq.s32.totalorder %s27, 0
      %p48 = por %p46, %p47
      %p49 = scmp.ne.s32.totalorder %s35, %s36
      %p50 = scmp.eq.s32.totalorder %s28, 1
      %p51 = por %p49, %p50
      %p53 = scmp.ne.s32.totalorder %s36, %s52
      %p54 = scmp.eq.s32.totalorder %s28, 0
      %p55 = por %p53, %p54
      %s57 = sadd.s32 %s56, 1
      %p60 = scmp.eq.s32.totalorder %s22, 1
      %p61 = scmp.ne.s32.totalorder %s56, %s58
      %p62 = scmp.eq.s32.totalorder %s22, 0
      %p63 = por %p61, %p62
      %p64 = scmp.ne.s32.totalorder %s56, %s58
      %p65 = scmp.eq.s32.totalorder %s27, 1
      %p66 = por %p64, %p65
      %p67 = scmp.ne.s32.totalorder %s58, %s59
      %p68 = scmp.eq.s32.totalorder %s27, 0
      %p69 = por %p67, %p68
      %p70 = scmp.ne.s32.totalorder %s58, %s59
      %p71 = scmp.eq.s32.totalorder %s28, 1
      %p72 = por %p70, %p71
      %p74 = scmp.ne.s32.totalorder %s59, %s73
      %p75 = scmp.eq.s32.totalorder %s28, 0
      %p76 = por %p74, %p75
      %s78 = sadd.s32 %s77, 1
      %p81 = scmp.eq.s32.totalorder %s22, 1
      %p82 = scmp.ne.s32.totalorder %s77, %s79
      %p83 = scmp.eq.s32.totalorder %s22, 0
      %p84 = por %p82, %p83
      %p85 = scmp.ne.s32.totalorder %s77, %s79
      %p86 = scmp.eq.s32.totalorder %s27, 1
      %p87 = por %p85, %p86
      %p88 = scmp.ne.s32.totalorder %s79, %s80
      %p89 = scmp.eq.s32.totalorder %s27, 0
      %p90 = por %p88, %p89
      %p91 = scmp.ne.s32.totalorder %s79, %s80
      %p92 = scmp.eq.s32.totalorder %s28, 1
      %p93 = por %p91, %p92
      %p95 = scmp.ne.s32.totalorder %s80, %s94
      %p96 = scmp.eq.s32.totalorder %s28, 0
      %p97 = por %p95, %p96
      %s99 = sadd.s32 %s98, 1
      %p102 = scmp.eq.s32.totalorder %s22, 1
      %p103 = scmp.ne.s32.totalorder %s98, %s100
      %p104 = scmp.eq.s32.totalorder %s22, 0
      %p105 = por %p103, %p104
      %p106 = scmp.ne.s32.totalorder %s98, %s100
      %p107 = scmp.eq.s32.totalorder %s27, 1
      %p108 = por %p106, %p107
      %p109 = scmp.ne.s32.totalorder %s100, %s101
      %p110 = scmp.eq.s32.totalorder %s27, 0
      %p111 = por %p109, %p110
      %p112 = scmp.ne.s32.totalorder %s100, %s101
      %p113 = scmp.eq.s32.totalorder %s28, 1
      %p114 = por %p112, %p113
      %p116 = scmp.ne.s32.totalorder %s101, %s115
      %p117 = scmp.eq.s32.totalorder %s28, 0
      %p118 = por %p116, %p117
      %s120 = sadd.s32 %s119, 1
      %p123 = scmp.eq.s32.totalorder %s22, 1
      %p124 = scmp.ne.s32.totalorder %s119, %s121
      %p125 = scmp.eq.s32.totalorder %s22, 0
      %p126 = por %p124, %p125
      %p127 = scmp.ne.s32.totalorder %s119, %s121
      %p128 = scmp.eq.s32.totalorder %s27, 1
      %p129 = por %p127, %p128
      %p130 = scmp.ne.s32.totalorder %s121, %s122
      %p131 = scmp.eq.s32.totalorder %s27, 0
      %p132 = por %p130, %p131
      %p133 = scmp.ne.s32.totalorder %s121, %s122
      %p134 = scmp.eq.s32.totalorder %s28, 1
      %p135 = por %p133, %p134
      %p137 = scmp.ne.s32.totalorder %s122, %s136
      %p138 = scmp.eq.s32.totalorder %s28, 0
      %p139 = por %p137, %p138
      %s141 = sadd.s32 %s140, 1
      %p144 = scmp.eq.s32.totalorder %s22, 1
      %p145 = scmp.ne.s32.totalorder %s140, %s142
      %p146 = scmp.eq.s32.totalorder %s22, 0
      %p147 = por %p145, %p146
      %p148 = scmp.ne.s32.totalorder %s140, %s142
      %p149 = scmp.eq.s32.totalorder %s27, 1
      %p150 = por %p148, %p149
      %p151 = scmp.ne.s32.totalorder %s142, %s143
      %p152 = scmp.eq.s32.totalorder %s27, 0
      %p153 = por %p151, %p152
      %p154 = scmp.ne.s32.totalorder %s142, %s143
      %p155 = scmp.eq.s32.totalorder %s28, 1
      %p156 = por %p154, %p155
      %p158 = scmp.ne.s32.totalorder %s143, %s157
      %p159 = scmp.eq.s32.totalorder %s28, 0
      %p160 = por %p158, %p159
      %s162 = sadd.s32 %s161, 1
      %p165 = scmp.eq.s32.totalorder %s22, 1
      %p166 = scmp.ne.s32.totalorder %s161, %s163
      %p167 = scmp.eq.s32.totalorder %s22, 0
      %p168 = por %p166, %p167
      %p169 = scmp.ne.s32.totalorder %s161, %s163
      %p170 = scmp.eq.s32.totalorder %s27, 1
      %p171 = por %p169, %p170
      %p172 = scmp.ne.s32.totalorder %s163, %s164
      %p173 = scmp.eq.s32.totalorder %s27, 0
      %p174 = por %p172, %p173
      %p175 = scmp.ne.s32.totalorder %s163, %s164
      %p176 = scmp.eq.s32.totalorder %s28, 1
      %p177 = por %p175, %p176
      %p179 = scmp.ne.s32.totalorder %s164, %s178
      %p180 = scmp.eq.s32.totalorder %s28, 0
      %p181 = por %p179, %p180
      %s182 = ssub.s32 %s22, %s29
      %p183 = scmp.eq.s32.totalorder %s182, 0
      %s185 = sadd.s32 %s184, 1
      %s186 = scalar_select %p183, %s184, %s185
      %p189 = pneg %p183
      %p190 = scmp.eq.s32.totalorder %s22, 1
      %p191 = por %p189, %p190
      %p192 = scmp.ne.s32.totalorder %s184, %s187
      %p193 = scmp.eq.s32.totalorder %s22, 0
      %p194 = por %p192, %p193
      %p195 = scmp.ne.s32.totalorder %s184, %s187
      %p196 = scmp.eq.s32.totalorder %s27, 1
      %p197 = por %p195, %p196
      %p198 = scmp.ne.s32.totalorder %s187, %s188
      %p199 = scmp.eq.s32.totalorder %s27, 0
      %p200 = por %p198, %p199
      %p201 = scmp.ne.s32.totalorder %s187, %s188
      %p202 = scmp.eq.s32.totalorder %s28, 1
      %p203 = por %p201, %p202
      %p205 = scmp.ne.s32.totalorder %s188, %s204
      %p206 = scmp.eq.s32.totalorder %s28, 0
      %p207 = por %p205, %p206
      %p208 = scmp.le.s32.totalorder 1, %s22
      %p209 = scmp.lt.s32.totalorder %s22, 3
      %p210 = pnand %p208, %p209
      %p211 = pneg %p210
      // Predicated region
      $region9: #{dino_head_forward.2} parent=5 // pred_check
        _
      $region10: #{dino_head_forward.2} parent=5 // pred_check_branch
        %213 = sbr.rel (%p210) target = $region12
      $region11: #{dino_head_forward.2} parent=5 // pred_region
        %s214 = ssub.s32 %s22, 1
        // Predicated region
        $region13: #{dino_head_forward.2} parent=11 // pred_check
          %p215 = pneg %p69
        $region14: #{dino_head_forward.2} parent=11 // pred_check_branch
          %217 = sbr.rel (%p215) target = $region16
        $region15: #{dino_head_forward.2} parent=11 // pred_region
          %s219 = ssub.s32 2048, 2048
          %220 = vsyncadd [#allocation6], %s219
          %s221 = sshll.u32 [#allocation5], 4
          %s222 = int_to_ptr.vmem [resolvable:$true] %s221
          %227 = dma.hbm_to_vmem [thread:$0]  %s1, 2048, %s222, [#allocation6], 128, 128, 8
        $region16: #{dino_head_forward.2} parent=11 // pred_fallthru
          _
        // Predicated region
        $region17: #{dino_head_forward.2} parent=11 // pred_check
          %p228 = pneg %p90
        $region18: #{dino_head_forward.2} parent=11 // pred_check_branch
          %230 = sbr.rel (%p228) target = $region20
        $region19: #{dino_head_forward.2} parent=11 // pred_region
          %s232 = ssub.s32 32, 32
          %233 = vsyncadd [#allocation6], %s232
          %s235 = sshll.u32 [#allocation7], 4
          %s236 = int_to_ptr.vmem [resolvable:$true] %s235
          %238 = dma.hbm_to_vmem [thread:$0]  %s2, 32, %s236, [#allocation6]
        $region20: #{dino_head_forward.2} parent=11 // pred_fallthru
          _
        // Predicated region
        $region21: #{dino_head_forward.2} parent=11 // pred_check
          %p239 = pneg %p111
        $region22: #{dino_head_forward.2} parent=11 // pred_check_branch
          %241 = sbr.rel (%p239) target = $region24
        $region23: #{dino_head_forward.2} parent=11 // pred_region
          %s243 = ssub.s32 4096, 4096
          %244 = vsyncadd [#allocation9], %s243
          %s245 = sshll.u32 [#allocation8], 4
          %s246 = int_to_ptr.vmem [resolvable:$true] %s245
          %251 = dma.hbm_to_vmem [thread:$0]  %s3, 4096, %s246, [#allocation9], 128, 128, 8
        $region24: #{dino_head_forward.2} parent=11 // pred_fallthru
          _
        // Predicated region
        $region25: #{dino_head_forward.2} parent=11 // pred_check
          %p252 = pneg %p132
        $region26: #{dino_head_forward.2} parent=11 // pred_check_branch
          %254 = sbr.rel (%p252) target = $region28
        $region27: #{dino_head_forward.2} parent=11 // pred_region
          %s256 = ssub.s32 32, 32
          %257 = vsyncadd [#allocation9], %s256
          %s259 = sshll.u32 [#allocation10], 4
          %s260 = int_to_ptr.vmem [resolvable:$true] %s259
          %262 = dma.hbm_to_vmem [thread:$0]  %s4, 32, %s260, [#allocation9]
        $region28: #{dino_head_forward.2} parent=11 // pred_fallthru
          _
        // Predicated region
        $region29: #{dino_head_forward.2} parent=11 // pred_check
          %p263 = pneg %p153
        $region30: #{dino_head_forward.2} parent=11 // pred_check_branch
          %265 = sbr.rel (%p263) target = $region32
        $region31: #{dino_head_forward.2} parent=11 // pred_region
          %s267 = ssub.s32 2048, 2048
          %268 = vsyncadd [#allocation12], %s267
          %s269 = sshll.u32 [#allocation11], 4
          %s270 = int_to_ptr.vmem [resolvable:$true] %s269
          %275 = dma.hbm_to_vmem [thread:$0]  %s5, 2048, %s270, [#allocation12], 64, 64, 4
        $region32: #{dino_head_forward.2} parent=11 // pred_fallthru
          _
        // Predicated region
        $region33: #{dino_head_forward.2} parent=11 // pred_check
          %p276 = pneg %p174
        $region34: #{dino_head_forward.2} parent=11 // pred_check_branch
          %278 = sbr.rel (%p276) target = $region36
        $region35: #{dino_head_forward.2} parent=11 // pred_region
          %s280 = ssub.s32 16, 16
          %281 = vsyncadd [#allocation12], %s280
          %s283 = sshll.u32 [#allocation13], 4
          %s284 = int_to_ptr.vmem [resolvable:$true] %s283
          %286 = dma.hbm_to_vmem [thread:$0]  %s6, 16, %s284, [#allocation12]
        $region36: #{dino_head_forward.2} parent=11 // pred_fallthru
          _
      $region12: #{dino_head_forward.2} parent=5 // pred_fallthru
        _
      %p287 = scmp.lt.s32.totalorder %s22, 2
      // Predicated region
      $region37: #{dino_head_forward.2} parent=5 // pred_check
        %p288 = pneg %p287
      $region38: #{dino_head_forward.2} parent=5 // pred_check_branch
        %290 = sbr.rel (%p288) target = $region40
      $region39: #{dino_head_forward.2} parent=5 // pred_region
        // Predicated region
        $region41: #{dino_head_forward.2} parent=39 // pred_check
          %p291 = pneg %p42
        $region42: #{dino_head_forward.2} parent=39 // pred_check_branch
          %293 = sbr.rel (%p291) target = $region44
        $region43: #{dino_head_forward.2} parent=39 // pred_region
          %s294 = sand.u32 %s32, 1
          %s295 = scalar_lea.sflag [#allocation3], %s294
          %s296 = sand.u32 %s32, 1
          %s297 = smul.addr %s296, 4
          %s298 = scalar_lea.vmem [#allocation2], %s297
          %s300 = ssub.s32 64, 64
          %301 = vsyncadd %s295, %s300
          %s302 = smul.addr %s22, 64
          %s303 = scalar_lea.hbm %s0, %s302
          %s305 = sshll.u32 %s298, 4
          %s306 = int_to_ptr.vmem [resolvable:$true] %s305
          %308 = dma.hbm_to_vmem [thread:$0]  %s303, 64, %s306, %s295
        $region44: #{dino_head_forward.2} parent=39 // pred_fallthru
          _
      $region40: #{dino_head_forward.2} parent=5 // pred_fallthru
        _
      %p309 = scmp.le.s32.totalorder 1, %s22
      %p310 = scmp.lt.s32.totalorder %s22, 3
      %p311 = pnand %p309, %p310
      %p312 = pneg %p311
      // Predicated region
      $region45: #{dino_head_forward.2} parent=5 // pred_check
        _
      $region46: #{dino_head_forward.2} parent=5 // pred_check_branch
        %314 = sbr.rel (%p311) target = $region48
      $region47: #{dino_head_forward.2} parent=5 // pred_region
        %s315 = ssub.s32 %s22, 1
        %s316 = sand.u32 %s35, 1
        %s317 = scalar_lea.sflag [#allocation3], %s316
        %s318 = sand.u32 %s35, 1
        %s319 = smul.addr %s318, 4
        %s320 = scalar_lea.vmem [#allocation2], %s319
        // Predicated region
        $region49: #{dino_head_forward.2} parent=47 // pred_check
          %p321 = pneg %p48
        $region50: #{dino_head_forward.2} parent=47 // pred_check_branch
          %323 = sbr.rel (%p321) target = $region52
        $region51: #{dino_head_forward.2} parent=47 // pred_region
          %324 = dma.done %s317, 64
        $region52: #{dino_head_forward.2} parent=47 // pred_fallthru
          _
        // Predicated region
        $region53: #{dino_head_forward.2} parent=47 // pred_check
          %p325 = pneg %p69
        $region54: #{dino_head_forward.2} parent=47 // pred_check_branch
          %327 = sbr.rel (%p325) target = $region56
        $region55: #{dino_head_forward.2} parent=47 // pred_region
          %328 = dma.done [#allocation6], 2048
        $region56: #{dino_head_forward.2} parent=47 // pred_fallthru
          _
        // Predicated region
        $region57: #{dino_head_forward.2} parent=47 // pred_check
          %p329 = pneg %p90
        $region58: #{dino_head_forward.2} parent=47 // pred_check_branch
          %331 = sbr.rel (%p329) target = $region60
        $region59: #{dino_head_forward.2} parent=47 // pred_region
          %332 = dma.done [#allocation6], 32
        $region60: #{dino_head_forward.2} parent=47 // pred_fallthru
          _
        // Predicated region
        $region61: #{dino_head_forward.2} parent=47 // pred_check
          %p333 = pneg %p111
        $region62: #{dino_head_forward.2} parent=47 // pred_check_branch
          %335 = sbr.rel (%p333) target = $region64
        $region63: #{dino_head_forward.2} parent=47 // pred_region
          %336 = dma.done [#allocation9], 4096
        $region64: #{dino_head_forward.2} parent=47 // pred_fallthru
          _
        // Predicated region
        $region65: #{dino_head_forward.2} parent=47 // pred_check
          %p337 = pneg %p132
        $region66: #{dino_head_forward.2} parent=47 // pred_check_branch
          %339 = sbr.rel (%p337) target = $region68
        $region67: #{dino_head_forward.2} parent=47 // pred_region
          %340 = dma.done [#allocation9], 32
        $region68: #{dino_head_forward.2} parent=47 // pred_fallthru
          _
        // Predicated region
        $region69: #{dino_head_forward.2} parent=47 // pred_check
          %p341 = pneg %p153
        $region70: #{dino_head_forward.2} parent=47 // pred_check_branch
          %343 = sbr.rel (%p341) target = $region72
        $region71: #{dino_head_forward.2} parent=47 // pred_region
          %344 = dma.done [#allocation12], 2048
        $region72: #{dino_head_forward.2} parent=47 // pred_fallthru
          _
        // Predicated region
        $region73: #{dino_head_forward.2} parent=47 // pred_check
          %p345 = pneg %p174
        $region74: #{dino_head_forward.2} parent=47 // pred_check_branch
          %347 = sbr.rel (%p345) target = $region76
        $region75: #{dino_head_forward.2} parent=47 // pred_region
          %348 = dma.done [#allocation12], 16
        $region76: #{dino_head_forward.2} parent=47 // pred_fallthru
          _
        %s349 = sand.u32 %s35, 1
        %s350 = scalar_lea.sflag [#allocation3], %s349
        %s351 = sand.u32 %s35, 1
        %s352 = smul.addr %s351, 4
        %s353 = scalar_lea.vmem [#allocation2], %s352
        %p354 = pneg %p48
        %p355 = pneg %p45
        %p356 = pneg %p69
        %p357 = pneg %p66
        %p358 = pneg %p90
        %p359 = pneg %p87
        %p360 = pneg %p111
        %p361 = pneg %p108
        %p362 = pneg %p132
        %p363 = pneg %p129
        %p364 = pneg %p153
        %p365 = pneg %p150
        %p366 = pneg %p174
        %p367 = pneg %p171
        %p368 = pneg %p200
        %p369 = pneg %p197
        %s370 = sand.u32 %s187, 1
        %s371 = scalar_lea.sflag [#allocation4], %s370
        %s372 = sand.u32 %s187, 1
        %s373 = smul.addr %s372, 4
        %s374 = scalar_lea.vmem [#allocation14], %s373
        %v376 = vld [vmem:[%s320] sm:$0xf]
        %v377 = vld [vmem:[#allocation5] sm:$0xff]
        %v378 = vld [vmem:[#allocation5 + $0x8] sm:$0xff]
        %v379 = vld [vmem:[#allocation5 + $0x10] sm:$0xff]
        %v380 = vld [vmem:[#allocation5 + $0x18] sm:$0xff]
        %v381 = vld [vmem:[#allocation5 + $0x20] sm:$0xff]
        %v382 = vld [vmem:[#allocation5 + $0x28] sm:$0xff]
        %v383 = vld [vmem:[#allocation5 + $0x30] sm:$0xff]
        %v384 = vld [vmem:[#allocation5 + $0x38] sm:$0xff]
        %v385 = vld [vmem:[#allocation5 + $0x40] sm:$0xff]
        %v386 = vld [vmem:[#allocation5 + $0x48] sm:$0xff]
        %v387 = vld [vmem:[#allocation5 + $0x50] sm:$0xff]
        %v388 = vld [vmem:[#allocation5 + $0x58] sm:$0xff]
        %v389 = vld [vmem:[#allocation5 + $0x60] sm:$0xff]
        %v390 = vld [vmem:[#allocation5 + $0x68] sm:$0xff]
        %v391 = vld [vmem:[#allocation5 + $0x70] sm:$0xff]
        %v392 = vld [vmem:[#allocation5 + $0x78] sm:$0xff]
        %v393 = vld [vmem:[#allocation7] sm:$0x3]
        %v395 = vlaneseq
        %v396 = vshrl.u32 %v395, 7
        %v397 = vsub.s32 0, %v396
        %v398 = vrot.slane %v393, %v397
        %v399 = vlaneseq
        %v400 = vshrl.u32 %v399, 7
        %v401 = vsub.s32 1, %v400
        %v402 = vrot.slane %v393, %v401
        %v421 = vunpack.c.l.b16 %v377
        %v422 = vunpack.c.h.b16 %v377
        %v423 = vunpack.c.l.b16 %v378
        %v424 = vunpack.c.h.b16 %v378
        %v425 = vunpack.c.l.b16 %v379
        %v426 = vunpack.c.h.b16 %v379
        %v427 = vunpack.c.l.b16 %v380
        %v428 = vunpack.c.h.b16 %v380
        %v429 = vunpack.c.l.b16 %v381
        %v430 = vunpack.c.h.b16 %v381
        %v431 = vunpack.c.l.b16 %v382
        %v432 = vunpack.c.h.b16 %v382
        %v433 = vunpack.c.l.b16 %v383
        %v434 = vunpack.c.h.b16 %v383
        %v435 = vunpack.c.l.b16 %v384
        %v436 = vunpack.c.h.b16 %v384
        %v437 = vunpack.c.l.b16 %v385
        %v438 = vunpack.c.h.b16 %v385
        %v439 = vunpack.c.l.b16 %v386
        %v440 = vunpack.c.h.b16 %v386
        %v441 = vunpack.c.l.b16 %v387
        %v442 = vunpack.c.h.b16 %v387
        %v443 = vunpack.c.l.b16 %v388
        %v444 = vunpack.c.h.b16 %v388
        %v445 = vunpack.c.l.b16 %v389
        %v446 = vunpack.c.h.b16 %v389
        %v447 = vunpack.c.l.b16 %v390
        %v448 = vunpack.c.h.b16 %v390
        %v449 = vunpack.c.l.b16 %v391
        %v450 = vunpack.c.h.b16 %v391
        %v451 = vunpack.c.l.b16 %v392
        %v452 = vunpack.c.h.b16 %v392
        %v453 = vpack.c.b16 %v423, %v421
        %v454 = vpack.c.b16 %v424, %v422
        %v455 = vpack.c.b16 %v427, %v425
        %v456 = vpack.c.b16 %v428, %v426
        %v457 = vpack.c.b16 %v431, %v429
        %v458 = vpack.c.b16 %v432, %v430
        %v459 = vpack.c.b16 %v435, %v433
        %v460 = vpack.c.b16 %v436, %v434
        %v461 = vpack.c.b16 %v439, %v437
        %v462 = vpack.c.b16 %v440, %v438
        %v463 = vpack.c.b16 %v443, %v441
        %v464 = vpack.c.b16 %v444, %v442
        %v465 = vpack.c.b16 %v447, %v445
        %v466 = vpack.c.b16 %v448, %v446
        %v467 = vpack.c.b16 %v451, %v449
        %v468 = vpack.c.b16 %v452, %v450
        %485 = vmatprep.subr.bf16.mxu0 %v454
        %486 = vmatpush1.bf16.msra.mxu0 %v453
        %487 = vmatprep.subr.bf16.mxu0 %v456
        %488 = vmatpush1.bf16.msra.mxu0 %v455
        %489 = vmatprep.subr.bf16.mxu0 %v458
        %490 = vmatpush1.bf16.msra.mxu0 %v457
        %491 = vmatprep.subr.bf16.mxu0 %v460
        %492 = vmatpush1.bf16.msra.mxu0 %v459
        %493 = vmatprep.subr.bf16.mxu0 %v462
        %494 = vmatpush1.bf16.msra.mxu0 %v461
        %495 = vmatprep.subr.bf16.mxu0 %v464
        %496 = vmatpush1.bf16.msra.mxu0 %v463
        %497 = vmatprep.subr.bf16.mxu0 %v466
        %498 = vmatpush1.bf16.msra.mxu0 %v465
        %499 = vmatprep.subr.bf16.mxu0 %v468
        %500 = vmatpush1.bf16.msra.mxu0 %v467
        %501 = vmatprep.subr.bf16.mxu0 0
        %502 = vmatpush1.bf16.msra.mxu0 0
        %503 = vmatprep.subr.bf16.mxu0 0
        %504 = vmatpush1.bf16.msra.mxu0 0
        %505 = vmatprep.subr.bf16.mxu0 0
        %506 = vmatpush1.bf16.msra.mxu0 0
        %507 = vmatprep.subr.bf16.mxu0 0
        %508 = vmatpush1.bf16.msra.mxu0 0
        %509 = vmatprep.subr.bf16.mxu0 0
        %510 = vmatpush1.bf16.msra.mxu0 0
        %511 = vmatprep.subr.bf16.mxu0 0
        %512 = vmatpush1.bf16.msra.mxu0 0
        %513 = vmatprep.subr.bf16.mxu0 0
        %514 = vmatpush1.bf16.msra.mxu0 0
        %515 = vmatprep.subr.bf16.mxu0 0
        %516 = vmatpush1.bf16.msra.mxu0 0
        %517 = vmatprep.mubr.bf16.mxu0 0
        %518 = vmatmul.mubr.bf16.gmra.mrb[0].mxu0 %v376
        %v519 = vpop.f32.mrb[0].mxu0
        %v520 = vadd.f32 %v398, %v519
        %v521 = vpop.f32.mrb[0].mxu0
        %v522 = vadd.f32 %v402, %v521
        %v523 = vpop.f32.mrb[0].mxu0
        %v524 = vpop.f32.mrb[0].mxu0
        %525 = vdwg.mxu0
        %v526 = vmul.f32 %v520, 0.5
        %v527 = vmul.f32 %v522, 0.5
        %v528 = vrcp.pop 1.4142135
        %v529 = vmul.f32 %v520, %v528
        %v530 = vmul.f32 %v522, %v528
        %v531 = vand.u32 2147483647, %v529
        %v532 = vand.u32 2147483647, %v530
        %v533 = vmul.f32 %v531, 0.3275911
        %v534 = vmul.f32 %v532, 0.3275911
        %v535 = vadd.f32 %v533, 1.0
        %v536 = vadd.f32 %v534, 1.0
        %v537 = vrcp.pop %v535
        %v538 = vmul.f32 1.0, %v537
        %v539 = vrcp.pop %v536
        %v540 = vmul.f32 1.0, %v539
        %v541 = vmul.f32 %v538, 1.0614054
        %v542 = vmul.f32 %v540, 1.0614054
        %v543 = vadd.f32 %v541, -1.4531521
        %v544 = vadd.f32 %v542, -1.4531521
        %v545 = vmul.f32 %v543, %v538
        %v546 = vmul.f32 %v544, %v540
        %v547 = vadd.f32 %v545, 1.4214138
        %v548 = vadd.f32 %v546, 1.4214138
        %v549 = vmul.f32 %v547, %v538
        %v550 = vmul.f32 %v548, %v540
        %v551 = vadd.f32 %v549, -0.28449672
        %v552 = vadd.f32 %v550, -0.28449672
        %v553 = vmul.f32 %v551, %v538
        %v554 = vmul.f32 %v552, %v540
        %v555 = vadd.f32 %v553, 0.2548296
        %v556 = vadd.f32 %v554, 0.2548296
        %v557 = vmul.f32 %v555, %v538
        %v558 = vmul.f32 %v556, %v540
        %v559 = vsub.f32 0.0, %v531
        %v560 = vsub.f32 0.0, %v532
        %v561 = vmul.f32 %v559, %v531
        %v562 = vmul.f32 %v560, %v532
        %v563 = vmul.f32 %v561, 1.442695
        %v564 = vpow.pop %v563
        %v565 = vmul.f32 %v562, 1.442695
        %v566 = vpow.pop %v565
        %v567 = vmul.f32 %v557, %v564
        %v568 = vmul.f32 %v558, %v566
        %v569 = vsub.f32 1.0, %v567
        %v570 = vsub.f32 1.0, %v568
        %vm571 = vcmp.ge.f32.partialorder %v529, 0.0
        %vm572 = vcmp.ge.f32.partialorder %v530, 0.0
        %v573 = vsub.f32 0.0, %v569
        %v574 = vsub.f32 0.0, %v570
        %v575 = vsel %vm571, %v569, %v573
        %v576 = vsel %vm572, %v570, %v574
        %v577 = vadd.f32 %v575, 1.0
        %v578 = vadd.f32 %v576, 1.0
        %v579 = vmul.f32 %v526, %v577
        %v580 = vmul.f32 %v527, %v578
        %v581 = vpack.c.bf16 %v579, %v579
        %v582 = vpack.c.bf16 %v580, %v580
        %v583 = vld [vmem:[#allocation8] sm:$0xff]
        %v584 = vld [vmem:[#allocation8 + $0x8] sm:$0xff]
        %v585 = vld [vmem:[#allocation8 + $0x10] sm:$0xff]
        %v586 = vld [vmem:[#allocation8 + $0x18] sm:$0xff]
        %v587 = vld [vmem:[#allocation8 + $0x20] sm:$0xff]
        %v588 = vld [vmem:[#allocation8 + $0x28] sm:$0xff]
        %v589 = vld [vmem:[#allocation8 + $0x30] sm:$0xff]
        %v590 = vld [vmem:[#allocation8 + $0x38] sm:$0xff]
        %v591 = vld [vmem:[#allocation8 + $0x40] sm:$0xff]
        %v592 = vld [vmem:[#allocation8 + $0x48] sm:$0xff]
        %v593 = vld [vmem:[#allocation8 + $0x50] sm:$0xff]
        %v594 = vld [vmem:[#allocation8 + $0x58] sm:$0xff]
        %v595 = vld [vmem:[#allocation8 + $0x60] sm:$0xff]
        %v596 = vld [vmem:[#allocation8 + $0x68] sm:$0xff]
        %v597 = vld [vmem:[#allocation8 + $0x70] sm:$0xff]
        %v598 = vld [vmem:[#allocation8 + $0x78] sm:$0xff]
        %v599 = vld [vmem:[#allocation8 + $0x80] sm:$0xff]
        %v600 = vld [vmem:[#allocation8 + $0x88] sm:$0xff]
        %v601 = vld [vmem:[#allocation8 + $0x90] sm:$0xff]
        %v602 = vld [vmem:[#allocation8 + $0x98] sm:$0xff]
        %v603 = vld [vmem:[#allocation8 + $0xa0] sm:$0xff]
        %v604 = vld [vmem:[#allocation8 + $0xa8] sm:$0xff]
        %v605 = vld [vmem:[#allocation8 + $0xb0] sm:$0xff]
        %v606 = vld [vmem:[#allocation8 + $0xb8] sm:$0xff]
        %v607 = vld [vmem:[#allocation8 + $0xc0] sm:$0xff]
        %v608 = vld [vmem:[#allocation8 + $0xc8] sm:$0xff]
        %v609 = vld [vmem:[#allocation8 + $0xd0] sm:$0xff]
        %v610 = vld [vmem:[#allocation8 + $0xd8] sm:$0xff]
        %v611 = vld [vmem:[#allocation8 + $0xe0] sm:$0xff]
        %v612 = vld [vmem:[#allocation8 + $0xe8] sm:$0xff]
        %v613 = vld [vmem:[#allocation8 + $0xf0] sm:$0xff]
        %v614 = vld [vmem:[#allocation8 + $0xf8] sm:$0xff]
        %v615 = vld [vmem:[#allocation10] sm:$0x3]
        %v617 = vlaneseq
        %v618 = vshrl.u32 %v617, 7
        %v619 = vsub.s32 0, %v618
        %v620 = vrot.slane %v615, %v619
        %v621 = vlaneseq
        %v622 = vshrl.u32 %v621, 7
        %v623 = vsub.s32 1, %v622
        %v624 = vrot.slane %v615, %v623
        %v659 = vunpack.c.l.b16 %v583
        %v660 = vunpack.c.h.b16 %v583
        %v661 = vunpack.c.l.b16 %v584
        %v662 = vunpack.c.h.b16 %v584
        %v663 = vunpack.c.l.b16 %v585
        %v664 = vunpack.c.h.b16 %v585
        %v665 = vunpack.c.l.b16 %v586
        %v666 = vunpack.c.h.b16 %v586
        %v667 = vunpack.c.l.b16 %v587
        %v668 = vunpack.c.h.b16 %v587
        %v669 = vunpack.c.l.b16 %v588
        %v670 = vunpack.c.h.b16 %v588
        %v671 = vunpack.c.l.b16 %v589
        %v672 = vunpack.c.h.b16 %v589
        %v673 = vunpack.c.l.b16 %v590
        %v674 = vunpack.c.h.b16 %v590
        %v675 = vunpack.c.l.b16 %v591
        %v676 = vunpack.c.h.b16 %v591
        %v677 = vunpack.c.l.b16 %v592
        %v678 = vunpack.c.h.b16 %v592
        %v679 = vunpack.c.l.b16 %v593
        %v680 = vunpack.c.h.b16 %v593
        %v681 = vunpack.c.l.b16 %v594
        %v682 = vunpack.c.h.b16 %v594
        %v683 = vunpack.c.l.b16 %v595
        %v684 = vunpack.c.h.b16 %v595
        %v685 = vunpack.c.l.b16 %v596
        %v686 = vunpack.c.h.b16 %v596
        %v687 = vunpack.c.l.b16 %v597
        %v688 = vunpack.c.h.b16 %v597
        %v689 = vunpack.c.l.b16 %v598
        %v690 = vunpack.c.h.b16 %v598
        %v691 = vunpack.c.l.b16 %v599
        %v692 = vunpack.c.h.b16 %v599
        %v693 = vunpack.c.l.b16 %v600
        %v694 = vunpack.c.h.b16 %v600
        %v695 = vunpack.c.l.b16 %v601
        %v696 = vunpack.c.h.b16 %v601
        %v697 = vunpack.c.l.b16 %v602
        %v698 = vunpack.c.h.b16 %v602
        %v699 = vunpack.c.l.b16 %v603
        %v700 = vunpack.c.h.b16 %v603
        %v701 = vunpack.c.l.b16 %v604
        %v702 = vunpack.c.h.b16 %v604
        %v703 = vunpack.c.l.b16 %v605
        %v704 = vunpack.c.h.b16 %v605
        %v705 = vunpack.c.l.b16 %v606
        %v706 = vunpack.c.h.b16 %v606
        %v707 = vunpack.c.l.b16 %v607
        %v708 = vunpack.c.h.b16 %v607
        %v709 = vunpack.c.l.b16 %v608
        %v710 = vunpack.c.h.b16 %v608
        %v711 = vunpack.c.l.b16 %v609
        %v712 = vunpack.c.h.b16 %v609
        %v713 = vunpack.c.l.b16 %v610
        %v714 = vunpack.c.h.b16 %v610
        %v715 = vunpack.c.l.b16 %v611
        %v716 = vunpack.c.h.b16 %v611
        %v717 = vunpack.c.l.b16 %v612
        %v718 = vunpack.c.h.b16 %v612
        %v719 = vunpack.c.l.b16 %v613
        %v720 = vunpack.c.h.b16 %v613
        %v721 = vunpack.c.l.b16 %v614
        %v722 = vunpack.c.h.b16 %v614
        %v723 = vpack.c.b16 %v661, %v659
        %v724 = vpack.c.b16 %v662, %v660
        %v725 = vpack.c.b16 %v665, %v663
        %v726 = vpack.c.b16 %v666, %v664
        %v727 = vpack.c.b16 %v669, %v667
        %v728 = vpack.c.b16 %v670, %v668
        %v729 = vpack.c.b16 %v673, %v671
        %v730 = vpack.c.b16 %v674, %v672
        %v731 = vpack.c.b16 %v677, %v675
        %v732 = vpack.c.b16 %v678, %v676
        %v733 = vpack.c.b16 %v681, %v679
        %v734 = vpack.c.b16 %v682, %v680
        %v735 = vpack.c.b16 %v685, %v683
        %v736 = vpack.c.b16 %v686, %v684
        %v737 = vpack.c.b16 %v689, %v687
        %v738 = vpack.c.b16 %v690, %v688
        %v739 = vpack.c.b16 %v693, %v691
        %v740 = vpack.c.b16 %v694, %v692
        %v741 = vpack.c.b16 %v697, %v695
        %v742 = vpack.c.b16 %v698, %v696
        %v743 = vpack.c.b16 %v701, %v699
        %v744 = vpack.c.b16 %v702, %v700
        %v745 = vpack.c.b16 %v705, %v703
        %v746 = vpack.c.b16 %v706, %v704
        %v747 = vpack.c.b16 %v709, %v707
        %v748 = vpack.c.b16 %v710, %v708
        %v749 = vpack.c.b16 %v713, %v711
        %v750 = vpack.c.b16 %v714, %v712
        %v751 = vpack.c.b16 %v717, %v715
        %v752 = vpack.c.b16 %v718, %v716
        %v753 = vpack.c.b16 %v721, %v719
        %v754 = vpack.c.b16 %v722, %v720
        %787 = vmatprep.subr.bf16.mxu0 %v724
        %788 = vmatpush1.bf16.msra.mxu0 %v723
        %789 = vmatprep.subr.bf16.mxu0 %v726
        %790 = vmatpush1.bf16.msra.mxu0 %v725
        %791 = vmatprep.subr.bf16.mxu0 %v728
        %792 = vmatpush1.bf16.msra.mxu0 %v727
        %793 = vmatprep.subr.bf16.mxu0 %v730
        %794 = vmatpush1.bf16.msra.mxu0 %v729
        %795 = vmatprep.subr.bf16.mxu0 %v732
        %796 = vmatpush1.bf16.msra.mxu0 %v731
        %797 = vmatprep.subr.bf16.mxu0 %v734
        %798 = vmatpush1.bf16.msra.mxu0 %v733
        %799 = vmatprep.subr.bf16.mxu0 %v736
        %800 = vmatpush1.bf16.msra.mxu0 %v735
        %801 = vmatprep.subr.bf16.mxu0 %v738
        %802 = vmatpush1.bf16.msra.mxu0 %v737
        %803 = vmatprep.subr.bf16.mxu0 %v740
        %804 = vmatpush1.bf16.msra.mxu0 %v739
        %805 = vmatprep.subr.bf16.mxu0 %v742
        %806 = vmatpush1.bf16.msra.mxu0 %v741
        %807 = vmatprep.subr.bf16.mxu0 %v744
        %808 = vmatpush1.bf16.msra.mxu0 %v743
        %809 = vmatprep.subr.bf16.mxu0 %v746
        %810 = vmatpush1.bf16.msra.mxu0 %v745
        %811 = vmatprep.subr.bf16.mxu0 %v748
        %812 = vmatpush1.bf16.msra.mxu0 %v747
        %813 = vmatprep.subr.bf16.mxu0 %v750
        %814 = vmatpush1.bf16.msra.mxu0 %v749
        %815 = vmatprep.subr.bf16.mxu0 %v752
        %816 = vmatpush1.bf16.msra.mxu0 %v751
        %817 = vmatprep.subr.bf16.mxu0 %v754
        %818 = vmatpush1.bf16.msra.mxu0 %v753
        %819 = vmatprep.mubr.bf16.mxu0 %v582
        %820 = vmatmul.mubr.bf16.gmra.mrb[0].mxu0 %v581
        %v821 = vpop.f32.mrb[0].mxu0
        %v822 = vadd.f32 %v620, %v821
        %v823 = vpop.f32.mrb[0].mxu0
        %v824 = vadd.f32 %v624, %v823
        %v825 = vpop.f32.mrb[0].mxu0
        %v826 = vpop.f32.mrb[0].mxu0
        %827 = vdwg.mxu0
        %v828 = vmul.f32 %v822, 0.5
        %v829 = vmul.f32 %v824, 0.5
        %v830 = vmul.f32 %v822, %v528
        %v831 = vmul.f32 %v824, %v528
        %v832 = vand.u32 2147483647, %v830
        %v833 = vand.u32 2147483647, %v831
        %v834 = vmul.f32 %v832, 0.3275911
        %v835 = vmul.f32 %v833, 0.3275911
        %v836 = vadd.f32 %v834, 1.0
        %v837 = vadd.f32 %v835, 1.0
        %v838 = vrcp.pop %v836
        %v839 = vmul.f32 1.0, %v838
        %v840 = vrcp.pop %v837
        %v841 = vmul.f32 1.0, %v840
        %v842 = vmul.f32 %v839, 1.0614054
        %v843 = vmul.f32 %v841, 1.0614054
        %v844 = vadd.f32 %v842, -1.4531521
        %v845 = vadd.f32 %v843, -1.4531521
        %v846 = vmul.f32 %v844, %v839
        %v847 = vmul.f32 %v845, %v841
        %v848 = vadd.f32 %v846, 1.4214138
        %v849 = vadd.f32 %v847, 1.4214138
        %v850 = vmul.f32 %v848, %v839
        %v851 = vmul.f32 %v849, %v841
        %v852 = vadd.f32 %v850, -0.28449672
        %v853 = vadd.f32 %v851, -0.28449672
        %v854 = vmul.f32 %v852, %v839
        %v855 = vmul.f32 %v853, %v841
        %v856 = vadd.f32 %v854, 0.2548296
        %v857 = vadd.f32 %v855, 0.2548296
        %v858 = vmul.f32 %v856, %v839
        %v859 = vmul.f32 %v857, %v841
        %v860 = vsub.f32 0.0, %v832
        %v861 = vsub.f32 0.0, %v833
        %v862 = vmul.f32 %v860, %v832
        %v863 = vmul.f32 %v861, %v833
        %v864 = vmul.f32 %v862, 1.442695
        %v865 = vpow.pop %v864
        %v866 = vmul.f32 %v863, 1.442695
        %v867 = vpow.pop %v866
        %v868 = vmul.f32 %v858, %v865
        %v869 = vmul.f32 %v859, %v867
        %v870 = vsub.f32 1.0, %v868
        %v871 = vsub.f32 1.0, %v869
        %vm872 = vcmp.ge.f32.partialorder %v830, 0.0
        %vm873 = vcmp.ge.f32.partialorder %v831, 0.0
        %v874 = vsub.f32 0.0, %v870
        %v875 = vsub.f32 0.0, %v871
        %v876 = vsel %vm872, %v870, %v874
        %v877 = vsel %vm873, %v871, %v875
        %v878 = vadd.f32 %v876, 1.0
        %v879 = vadd.f32 %v877, 1.0
        %v880 = vmul.f32 %v828, %v878
        %v881 = vmul.f32 %v829, %v879
        %v882 = vpack.c.bf16 %v880, %v880
        %v883 = vpack.c.bf16 %v881, %v881
        %v884 = vld [vmem:[#allocation11] sm:$0xf]
        %v885 = vld [vmem:[#allocation11 + $0x4] sm:$0xf]
        %v886 = vld [vmem:[#allocation11 + $0x8] sm:$0xf]
        %v887 = vld [vmem:[#allocation11 + $0xc] sm:$0xf]
        %v888 = vld [vmem:[#allocation11 + $0x10] sm:$0xf]
        %v889 = vld [vmem:[#allocation11 + $0x14] sm:$0xf]
        %v890 = vld [vmem:[#allocation11 + $0x18] sm:$0xf]
        %v891 = vld [vmem:[#allocation11 + $0x1c] sm:$0xf]
        %v892 = vld [vmem:[#allocation11 + $0x20] sm:$0xf]
        %v893 = vld [vmem:[#allocation11 + $0x24] sm:$0xf]
        %v894 = vld [vmem:[#allocation11 + $0x28] sm:$0xf]
        %v895 = vld [vmem:[#allocation11 + $0x2c] sm:$0xf]
        %v896 = vld [vmem:[#allocation11 + $0x30] sm:$0xf]
        %v897 = vld [vmem:[#allocation11 + $0x34] sm:$0xf]
        %v898 = vld [vmem:[#allocation11 + $0x38] sm:$0xf]
        %v899 = vld [vmem:[#allocation11 + $0x3c] sm:$0xf]
        %v900 = vld [vmem:[#allocation11 + $0x40] sm:$0xf]
        %v901 = vld [vmem:[#allocation11 + $0x44] sm:$0xf]
        %v902 = vld [vmem:[#allocation11 + $0x48] sm:$0xf]
        %v903 = vld [vmem:[#allocation11 + $0x4c] sm:$0xf]
        %v904 = vld [vmem:[#allocation11 + $0x50] sm:$0xf]
        %v905 = vld [vmem:[#allocation11 + $0x54] sm:$0xf]
        %v906 = vld [vmem:[#allocation11 + $0x58] sm:$0xf]
        %v907 = vld [vmem:[#allocation11 + $0x5c] sm:$0xf]
        %v908 = vld [vmem:[#allocation11 + $0x60] sm:$0xf]
        %v909 = vld [vmem:[#allocation11 + $0x64] sm:$0xf]
        %v910 = vld [vmem:[#allocation11 + $0x68] sm:$0xf]
        %v911 = vld [vmem:[#allocation11 + $0x6c] sm:$0xf]
        %v912 = vld [vmem:[#allocation11 + $0x70] sm:$0xf]
        %v913 = vld [vmem:[#allocation11 + $0x74] sm:$0xf]
        %v914 = vld [vmem:[#allocation11 + $0x78] sm:$0xf]
        %v915 = vld [vmem:[#allocation11 + $0x7c] sm:$0xf]
        %v916 = vld [vmem:[#allocation13] sm:$0x1]
        %v918 = vlaneseq
        %v919 = vshrl.u32 %v918, 7
        %v920 = vsub.s32 0, %v919
        %v921 = vrot.slane %v916, %v920
        %v955 = vunpack.c.l.b16 %v884
        %v956 = vunpack.c.l.b16 %v885
        %v957 = vunpack.c.l.b16 %v886
        %v958 = vunpack.c.l.b16 %v887
        %v959 = vunpack.c.l.b16 %v888
        %v960 = vunpack.c.l.b16 %v889
        %v961 = vunpack.c.l.b16 %v890
        %v962 = vunpack.c.l.b16 %v891
        %v963 = vunpack.c.l.b16 %v892
        %v964 = vunpack.c.l.b16 %v893
        %v965 = vunpack.c.l.b16 %v894
        %v966 = vunpack.c.l.b16 %v895
        %v967 = vunpack.c.l.b16 %v896
        %v968 = vunpack.c.l.b16 %v897
        %v969 = vunpack.c.l.b16 %v898
        %v970 = vunpack.c.l.b16 %v899
        %v971 = vunpack.c.l.b16 %v900
        %v972 = vunpack.c.l.b16 %v901
        %v973 = vunpack.c.l.b16 %v902
        %v974 = vunpack.c.l.b16 %v903
        %v975 = vunpack.c.l.b16 %v904
        %v976 = vunpack.c.l.b16 %v905
        %v977 = vunpack.c.l.b16 %v906
        %v978 = vunpack.c.l.b16 %v907
        %v979 = vunpack.c.l.b16 %v908
        %v980 = vunpack.c.l.b16 %v909
        %v981 = vunpack.c.l.b16 %v910
        %v982 = vunpack.c.l.b16 %v911
        %v983 = vunpack.c.l.b16 %v912
        %v984 = vunpack.c.l.b16 %v913
        %v985 = vunpack.c.l.b16 %v914
        %v986 = vunpack.c.l.b16 %v915
        %v987 = vpack.c.b16 %v956, %v955
        %v988 = vpack.c.b16 %v958, %v957
        %v989 = vpack.c.b16 %v960, %v959
        %v990 = vpack.c.b16 %v962, %v961
        %v991 = vpack.c.b16 %v964, %v963
        %v992 = vpack.c.b16 %v966, %v965
        %v993 = vpack.c.b16 %v968, %v967
        %v994 = vpack.c.b16 %v970, %v969
        %v995 = vpack.c.b16 %v972, %v971
        %v996 = vpack.c.b16 %v974, %v973
        %v997 = vpack.c.b16 %v976, %v975
        %v998 = vpack.c.b16 %v978, %v977
        %v999 = vpack.c.b16 %v980, %v979
        %v1000 = vpack.c.b16 %v982, %v981
        %v1001 = vpack.c.b16 %v984, %v983
        %v1002 = vpack.c.b16 %v986, %v985
        %1019 = vmatprep.subr.bf16.mxu0 0
        %1020 = vmatpush1.bf16.msra.mxu0 %v987
        %1021 = vmatprep.subr.bf16.mxu0 0
        %1022 = vmatpush1.bf16.msra.mxu0 %v988
        %1023 = vmatprep.subr.bf16.mxu0 0
        %1024 = vmatpush1.bf16.msra.mxu0 %v989
        %1025 = vmatprep.subr.bf16.mxu0 0
        %1026 = vmatpush1.bf16.msra.mxu0 %v990
        %1027 = vmatprep.subr.bf16.mxu0 0
        %1028 = vmatpush1.bf16.msra.mxu0 %v991
        %1029 = vmatprep.subr.bf16.mxu0 0
        %1030 = vmatpush1.bf16.msra.mxu0 %v992
        %1031 = vmatprep.subr.bf16.mxu0 0
        %1032 = vmatpush1.bf16.msra.mxu0 %v993
        %1033 = vmatprep.subr.bf16.mxu0 0
        %1034 = vmatpush1.bf16.msra.mxu0 %v994
        %1035 = vmatprep.subr.bf16.mxu0 0
        %1036 = vmatpush1.bf16.msra.mxu0 %v995
        %1037 = vmatprep.subr.bf16.mxu0 0
        %1038 = vmatpush1.bf16.msra.mxu0 %v996
        %1039 = vmatprep.subr.bf16.mxu0 0
        %1040 = vmatpush1.bf16.msra.mxu0 %v997
        %1041 = vmatprep.subr.bf16.mxu0 0
        %1042 = vmatpush1.bf16.msra.mxu0 %v998
        %1043 = vmatprep.subr.bf16.mxu0 0
        %1044 = vmatpush1.bf16.msra.mxu0 %v999
        %1045 = vmatprep.subr.bf16.mxu0 0
        %1046 = vmatpush1.bf16.msra.mxu0 %v1000
        %1047 = vmatprep.subr.bf16.mxu0 0
        %1048 = vmatpush1.bf16.msra.mxu0 %v1001
        %1049 = vmatprep.subr.bf16.mxu0 0
        %1050 = vmatpush1.bf16.msra.mxu0 %v1002
        %1051 = vmatprep.mubr.bf16.mxu0 %v883
        %1052 = vmatmul.mubr.bf16.gmra.mrb[0].mxu0 %v882
        %v1053 = vpop.f32.mrb[0].mxu0
        %v1054 = vadd.f32 %v921, %v1053
        %v1055 = vpop.f32.mrb[0].mxu0
        %v1056 = vpop.f32.mrb[0].mxu0
        %v1057 = vpop.f32.mrb[0].mxu0
        %1058 = vdwg.mxu0
        %v1059 = vmul.f32 %v1054, %v1054
        %1060 = vadd.xlane.f32.xlu0 %v1059
        %v1061 = vpop.xlane.xlu0 %1060
        %v1062 = vmax.f32 %v1061, 1e-24
        %v1063 = vrsqrt.pop %v1062
        %v1064 = vmul.f32 %v1054, %v1063
        %v1065 = vpack.c.bf16 %v1064, %v1064
        %1066 = vst [vmem:[%s374] sm:$0xf] %v1065
        %s1067 = sand.u32 %s187, 1
        %s1068 = scalar_lea.sflag [#allocation4], %s1067
        %s1069 = sand.u32 %s187, 1
        %s1070 = smul.addr %s1069, 4
        %s1071 = scalar_lea.vmem [#allocation14], %s1070
        // Predicated region
        $region77: #{dino_head_forward.2} parent=47 // pred_check
          %p1072 = pneg %p197
        $region78: #{dino_head_forward.2} parent=47 // pred_check_branch
          %1074 = sbr.rel (%p1072) target = $region80
        $region79: #{dino_head_forward.2} parent=47 // pred_region
          %s1076 = ssub.s32 64, 64
          %1077 = vsyncadd %s1068, %s1076
          %s1078 = smul.addr %s27, 64
          %s1079 = scalar_lea.hbm %s7, %s1078
          %s1081 = sshll.u32 %s1071, 4
          %s1082 = int_to_ptr.vmem [resolvable:$true] %s1081
          %1084 = dma.vmem_to_hbm [thread:$0]  %s1082, 64, %s1079, %s1068
        $region80: #{dino_head_forward.2} parent=47 // pred_fallthru
          _
      $region48: #{dino_head_forward.2} parent=5 // pred_fallthru
        _
      %p1085 = scmp.le.s32.totalorder 2, %s22
      // Predicated region
      $region81: #{dino_head_forward.2} parent=5 // pred_check
        %p1086 = pneg %p1085
      $region82: #{dino_head_forward.2} parent=5 // pred_check_branch
        %1088 = sbr.rel (%p1086) target = $region84
      $region83: #{dino_head_forward.2} parent=5 // pred_region
        %s1089 = ssub.s32 %s22, 2
        // Predicated region
        $region85: #{dino_head_forward.2} parent=83 // pred_check
          %p1090 = pneg %p203
        $region86: #{dino_head_forward.2} parent=83 // pred_check_branch
          %1092 = sbr.rel (%p1090) target = $region88
        $region87: #{dino_head_forward.2} parent=83 // pred_region
          %s1093 = sand.u32 %s188, 1
          %s1094 = scalar_lea.sflag [#allocation4], %s1093
          %s1095 = sand.u32 %s188, 1
          %s1096 = smul.addr %s1095, 4
          %s1097 = scalar_lea.vmem [#allocation14], %s1096
          %1098 = dma.done %s1094, 64
        $region88: #{dino_head_forward.2} parent=83 // pred_fallthru
          _
      $region84: #{dino_head_forward.2} parent=5 // pred_fallthru
        _
    $region6: #{dino_head_forward.2} parent=1 // loop_footer
      %s26 = sadd.s32 1, %s22
    $region7: #{dino_head_forward.2} parent=1 // loop_footer_branch
      %21 = sbr.rel target = $region3
    $region8: #{dino_head_forward.2} parent=1 // loop_exit
      _
    %1099 = vsyncpa [#allocation3], 1
    %s1100 = scalar_lea.sflag [#allocation3], 1
    %1101 = vsyncpa %s1100, 1
    %1102 = vsyncpa [#allocation6], 1
    %1103 = vsyncpa [#allocation9], 1
    %1104 = vsyncpa [#allocation12], 1
    %1105 = vsyncpa [#allocation4], 1
    %s1106 = scalar_lea.sflag [#allocation4], 1
    %1107 = vsyncpa %s1106, 1

</llo_original>
